<compile_context>
chip_gen: v7x
topology: tpu7x:2x2x1
jax: 0.10.0
libtpu: 0.0.40
codegen_flags: <defaults>
</compile_context>

<pallas_src>
import functools
import math

import jax
import jax.numpy as jnp
from jax.experimental import pallas as pl
from jax.experimental.pallas import tpu as pltpu


def _round_up(v, m):
    return (v + m - 1) // m * m


# ----------------------------- Pallas kernel ------------------------------- #

def _gcnii_kernel(betas_ref,                          # scalar prefetch (SMEM, f32[L])
                  a_ref, x_ref, w_in_ref, b_in_ref,   # inputs (VMEM)
                  w1_ref, w2_ref, w_out_ref, b_out_ref,
                  o_ref,                              # output (VMEM)
                  h_ref, h0_ref,                      # scratch (persist over grid)
                  *, alpha, num_layers):
    """One grid step == one GCNII layer.

    step 0     : h = relu(x @ W_in + b_in);  h0 = h                (input Linear)
    every step : hi      = A_hat @ h
                 support = (1-b)(1-a)*hi + b*(hi @ W1_l)
                 initial = (1-b)*a *h0   + b*(h0 @ W2_l)
                 h       = relu(support + initial)
    last step  : out = h @ W_out + b_out                           (output Linear)
    """
    l = pl.program_id(0)

    @pl.when(l == 0)
    def _input_proj():
        h = jnp.dot(x_ref[...], w_in_ref[...], preferred_element_type=jnp.float32)
        h = jnp.maximum(h + b_in_ref[...], 0.0).astype(jnp.bfloat16)
        h_ref[...] = h
        h0_ref[...] = h

    beta = betas_ref[l]                       # f32 scalar from SMEM
    c_x = (1.0 - beta) * (1.0 - alpha)
    c_h0 = (1.0 - beta) * alpha

    h = h_ref[...]                            # bf16 [Np, Hp]
    h0 = h0_ref[...]                          # bf16 [Np, Hp]

    # Aggregate first: A_hat @ h (bf16 x bf16 -> f32 accumulate on the MXU).
    hi = jnp.dot(a_ref[...], h, preferred_element_type=jnp.float32)
    support = c_x * hi + beta * jnp.dot(hi.astype(jnp.bfloat16), w1_ref[...],
                                        preferred_element_type=jnp.float32)
    initial = c_h0 * h0.astype(jnp.float32) + beta * jnp.dot(
        h0, w2_ref[...], preferred_element_type=jnp.float32)
    h_new_f32 = jnp.maximum(support + initial, 0.0)   # f32 mix + ReLU on the VPU
    h_new = h_new_f32.astype(jnp.bfloat16)            # one cast per layer
    h_ref[...] = h_new

    @pl.when(l == num_layers - 1)
    def _output_proj():
        out = jnp.dot(h_new, w_out_ref[...], preferred_element_type=jnp.float32)
        o_ref[...] = (out + b_out_ref[...]).astype(o_ref.dtype)


# --------------------------------- Glue ------------------------------------ #

def gcn_norm_dense(edge_index, num_nodes, padded_nodes):
    """A_hat = D^-1/2 (A + I) D^-1/2, built directly at padded size (f32).

    Padded rows/cols have zero degree and therefore stay exactly zero.
    # TODO(synk): duplicate edges collapse to weight 1 and the graph is
    #             symmetrized (matches the previous accepted behavior).
    """
    row, col = edge_index[0], edge_index[1]
    a = jnp.zeros((padded_nodes, padded_nodes), jnp.float32)
    a = a.at[row, col].set(1.0)
    a = a.at[col, row].set(1.0)
    idx = jnp.arange(num_nodes)
    a = a.at[idx, idx].set(1.0)
    deg = a.sum(axis=1)
    dinv = jnp.where(deg > 0, 1.0 / jnp.sqrt(deg), 0.0)
    return dinv[:, None] * a * dinv[None, :]


def init_params(key, num_feats, dim_hidden, num_classes, num_layers):
    """Deterministic glorot-uniform weights / zero biases."""
    ks = jax.random.split(key, 2 + 2 * num_layers)

    def glorot(k, shape):
        lim = math.sqrt(6.0 / (shape[0] + shape[1]))
        return jax.random.uniform(k, shape, jnp.float32, -lim, lim)

    params = {
        "w_in": glorot(ks[0], (num_feats, dim_hidden)),
        "b_in": jnp.zeros((dim_hidden,), jnp.float32),
        "w_out": glorot(ks[1], (dim_hidden, num_classes)),
        "b_out": jnp.zeros((num_classes,), jnp.float32),
        "layers": [],
    }
    for i in range(num_layers):
        w1 = glorot(ks[2 + 2 * i], (dim_hidden, dim_hidden))
        w2 = glorot(ks[3 + 2 * i], (dim_hidden, dim_hidden))
        params["layers"].append((w1, w2))
    return params


def gcnii_forward(x, edge_index, params, *, alpha, lamda, num_layers):
    """Forward of GCNII (non-'ogbn-arxiv' branch)."""
    # TODO(synk): F.dropout is identity here (inference / training=False path).
    # TODO(synk): the reference also logs per-layer Dirichlet energy to a text
    #             file; host-side I/O side effect, no kernel equivalent.
    assert num_layers >= 1
    n, f = x.shape
    h = params["w_in"].shape[1]
    c = params["w_out"].shape[1]

    # Lane-dense padding: nodes / features / hidden / classes -> multiples of 128.
    n_p = _round_up(n, 128)
    f_p = _round_up(f, 128)
    h_p = _round_up(h, 128)
    c_p = _round_up(c, 128)

    # A_hat built at padded size, cast to bf16 once (memory-bound MXU operand).
    a_hat = gcn_norm_dense(edge_index, n, n_p).astype(jnp.bfloat16)

    def pad2(m, rows, cols):
        return jnp.pad(m, ((0, rows - m.shape[0]), (0, cols - m.shape[1])))

    x_p = pad2(x, n_p, f_p).astype(jnp.bfloat16)
    w_in = pad2(params["w_in"], f_p, h_p).astype(jnp.bfloat16)
    w_out = pad2(params["w_out"], h_p, c_p).astype(jnp.bfloat16)
    b_in = jnp.pad(params["b_in"], (0, h_p - h)).reshape(1, h_p)      # f32
    b_out = jnp.pad(params["b_out"], (0, c_p - c)).reshape(1, c_p)    # f32

    w1 = jnp.stack([w for (w, _) in params["layers"]])
    w2 = jnp.stack([w for (_, w) in params["layers"]])
    w1 = jnp.pad(w1, ((0, 0), (0, h_p - h), (0, h_p - h))).astype(jnp.bfloat16)
    w2 = jnp.pad(w2, ((0, 0), (0, h_p - h), (0, h_p - h))).astype(jnp.bfloat16)

    betas = jnp.array([math.log(lamda / (i + 1) + 1.0) for i in range(num_layers)],
                      jnp.float32)

    def _full(shape):
        nd = len(shape)
        return pl.BlockSpec(shape, lambda l, _betas, _nd=nd: (0,) * _nd)

    flops = int(2 * n_p * f_p * h_p
                + num_layers * (2 * n_p * n_p * h_p + 4 * n_p * h_p * h_p)
                + 2 * n_p * h_p * c_p)
    bytes_accessed = int(sum(int(a.size) * a.dtype.itemsize
                             for a in (a_hat, x_p, w_in, b_in, w1, w2, w_out, b_out))
                         + n_p * c_p * 4)

    out_p = pl.pallas_call(
        functools.partial(_gcnii_kernel, alpha=float(alpha),
                          num_layers=int(num_layers)),
        out_shape=jax.ShapeDtypeStruct((n_p, c_p), jnp.float32),
        grid_spec=pltpu.PrefetchScalarGridSpec(
            num_scalar_prefetch=1,
            grid=(num_layers,),
            in_specs=[
                _full((n_p, n_p)),                                        # A_hat bf16
                _full((n_p, f_p)),                                        # x     bf16
                _full((f_p, h_p)),                                        # W_in  bf16
                _full((1, h_p)),                                          # b_in  f32
                pl.BlockSpec((None, h_p, h_p), lambda l, _b: (l, 0, 0)),  # W1_l  bf16
                pl.BlockSpec((None, h_p, h_p), lambda l, _b: (l, 0, 0)),  # W2_l  bf16
                _full((h_p, c_p)),                                        # W_out bf16
                _full((1, c_p)),                                          # b_out f32
            ],
            out_specs=_full((n_p, c_p)),
            scratch_shapes=[pltpu.VMEM((n_p, h_p), jnp.bfloat16),         # h
                            pltpu.VMEM((n_p, h_p), jnp.bfloat16)],        # h0
        ),
        compiler_params=pltpu.CompilerParams(
            dimension_semantics=("arbitrary",),
            vmem_limit_bytes=32 * 1024 * 1024,
        ),
        cost_estimate=pl.CostEstimate(flops=flops, transcendentals=0,
                                      bytes_accessed=bytes_accessed),
    )(betas, a_hat, x_p, w_in, b_in, w1, w2, w_out, b_out)

    return out_p[:n, :c]


if __name__ == "__main__":
    key = jax.random.PRNGKey(0)
    k_x, k_e, k_p = jax.random.split(key, 3)

    num_nodes = 64
    num_feats = 16
    dim_hidden = 32
    num_classes = 7
    num_layers = 4
    num_edges = 128
    alpha = 0.1
    lamda = 0.5

    x = jax.random.normal(k_x, (num_nodes, num_feats), jnp.float32)
    edge_index = jax.random.randint(k_e, (2, num_edges), 0, num_nodes, jnp.int32)

    params = init_params(k_p, num_feats, dim_hidden, num_classes, num_layers)

    out = gcnii_forward(
        x, edge_index, params, alpha=alpha, lamda=lamda, num_layers=num_layers
    )
    out = jax.block_until_ready(out)

    assert out.shape == (num_nodes, num_classes)
    assert out.dtype == jnp.float32
    assert bool(jnp.all(jnp.isfinite(out)))

    # Pure-JAX f32 reference (kernel uses bf16 MXU operands -> loose tolerance).
    a_f32 = gcn_norm_dense(edge_index, num_nodes, num_nodes)
    h_ref = jnp.maximum(x @ params["w_in"] + params["b_in"], 0.0)
    h0_ref = h_ref
    for i, (w1_i, w2_i) in enumerate(params["layers"]):
        beta = math.log(lamda / (i + 1) + 1.0)
        support = (1.0 - beta) * (1.0 - alpha) * h_ref + beta * (h_ref @ w1_i)
        initial = (1.0 - beta) * alpha * h0_ref + beta * (h0_ref @ w2_i)
        h_ref = jnp.maximum(a_f32 @ support + initial, 0.0)
    ref = h_ref @ params["w_out"] + params["b_out"]

    rel_err = float(jnp.linalg.norm(out - ref) / (jnp.linalg.norm(ref) + 1e-6))
    assert rel_err < 0.2, f"relative error too large: {rel_err}"

    print("KERNEL_OK")
</pallas_src>

<mosaic_0001>
module attributes {stable_mosaic.version = 11 : i64} {
  func.func @_gcnii_kernel(%arg0: i32, %arg1: memref<4xf32, #tpu.memory_space<smem>>, %arg2: memref<128x128xbf16, #tpu.memory_space<vmem>>, %arg3: memref<128x128xbf16, #tpu.memory_space<vmem>>, %arg4: memref<128x128xbf16, #tpu.memory_space<vmem>>, %arg5: memref<1x128xf32, #tpu.memory_space<vmem>>, %arg6: memref<1x128x128xbf16, #tpu.memory_space<vmem>>, %arg7: memref<1x128x128xbf16, #tpu.memory_space<vmem>>, %arg8: memref<128x128xbf16, #tpu.memory_space<vmem>>, %arg9: memref<1x128xf32, #tpu.memory_space<vmem>>, %arg10: memref<128x128xf32, #tpu.memory_space<vmem>>, %arg11: memref<128x128xbf16, #tpu.memory_space<vmem>>, %arg12: memref<128x128xbf16, #tpu.memory_space<vmem>>) attributes {dimension_semantics = [#tpu.dimension_semantics<arbitrary>], iteration_bounds = array<i64: 4>, scalar_prefetch = 1 : i64, scratch_operands = 2 : i64, tpu.core_type = #tpu.core_type<tc>, window_params = [{pipeline_mode = #tpu.pipeline_mode<synchronous>, transform_indices = @transform_0, window_bounds = array<i64: 128, 128>}, {pipeline_mode = #tpu.pipeline_mode<synchronous>, transform_indices = @transform_1, window_bounds = array<i64: 128, 128>}, {pipeline_mode = #tpu.pipeline_mode<synchronous>, transform_indices = @transform_2, window_bounds = array<i64: 128, 128>}, {pipeline_mode = #tpu.pipeline_mode<synchronous>, transform_indices = @transform_3, window_bounds = array<i64: 1, 128>}, {transform_indices = @transform_4, window_bounds = array<i64: 1, 128, 128>}, {transform_indices = @transform_5, window_bounds = array<i64: 1, 128, 128>}, {pipeline_mode = #tpu.pipeline_mode<synchronous>, transform_indices = @transform_6, window_bounds = array<i64: 128, 128>}, {pipeline_mode = #tpu.pipeline_mode<synchronous>, transform_indices = @transform_7, window_bounds = array<i64: 1, 128>}, {pipeline_mode = #tpu.pipeline_mode<synchronous>, transform_indices = @transform_8, window_bounds = array<i64: 128, 128>}]} {
    %c0_i32 = arith.constant 0 : i32
    %0 = arith.cmpi eq, %arg0, %c0_i32 : i32
    %1 = arith.extui %0 : i1 to i32
    %c0_i32_0 = arith.constant 0 : i32
    %2 = arith.cmpi ne, %1, %c0_i32_0 : i32
    scf.if %2 {
      %c0_22 = arith.constant 0 : index
      %c0_23 = arith.constant 0 : index
      %39 = vector.load %arg3[%c0_22, %c0_23] : memref<128x128xbf16, #tpu.memory_space<vmem>>, vector<128x128xbf16>
      %c0_24 = arith.constant 0 : index
      %c0_25 = arith.constant 0 : index
      %40 = vector.load %arg4[%c0_24, %c0_25] : memref<128x128xbf16, #tpu.memory_space<vmem>>, vector<128x128xbf16>
      %cst_26 = arith.constant dense<0.000000e+00> : vector<128x128xf32>
      %41 = tpu.matmul %39, %40, %cst_26 {dimension_numbers = #tpu.dot_dimension_numbers<[1], [0], [0], [1], [0, 0, 1, 1], [], []>} : vector<128x128xbf16>, vector<128x128xbf16>, vector<128x128xf32> -> vector<128x128xf32>
      %c0_27 = arith.constant 0 : index
      %c0_28 = arith.constant 0 : index
      %42 = vector.load %arg5[%c0_27, %c0_28] : memref<1x128xf32, #tpu.memory_space<vmem>>, vector<1x128xf32>
      %43 = vector.broadcast %42 : vector<1x128xf32> to vector<128x128xf32>
      %44 = arith.addf %41, %43 : vector<128x128xf32>
      %cst_29 = arith.constant 0.000000e+00 : f32
      %45 = vector.broadcast %cst_29 : f32 to vector<128x128xf32>
      %46 = arith.maximumf %44, %45 : vector<128x128xf32>
      %47 = arith.truncf %46 : vector<128x128xf32> to vector<128x128xbf16>
      %c0_30 = arith.constant 0 : index
      %c0_31 = arith.constant 0 : index
      %48 = vector.load %arg11[%c0_30, %c0_31] : memref<128x128xbf16, #tpu.memory_space<vmem>>, vector<128x128xbf16>
      tpu.vector_store %arg11[%c0_30, %c0_31], %47 {strides = array<i32>} : memref<128x128xbf16, #tpu.memory_space<vmem>>, vector<128x128xbf16>,
      %c0_32 = arith.constant 0 : index
      %c0_33 = arith.constant 0 : index
      %49 = vector.load %arg12[%c0_32, %c0_33] : memref<128x128xbf16, #tpu.memory_space<vmem>>, vector<128x128xbf16>
      tpu.vector_store %arg12[%c0_32, %c0_33], %47 {strides = array<i32>} : memref<128x128xbf16, #tpu.memory_space<vmem>>, vector<128x128xbf16>,
    } else {
    }
    %3 = arith.index_cast %arg0 : i32 to index
    %4 = memref.load %arg1[%3] : memref<4xf32, #tpu.memory_space<smem>>
    %cst = arith.constant 1.000000e+00 : f32
    %5 = arith.subf %cst, %4 : f32
    %cst_1 = arith.constant 0.899999976 : f32
    %6 = arith.mulf %5, %cst_1 : f32
    %cst_2 = arith.constant 1.000000e+00 : f32
    %7 = arith.subf %cst_2, %4 : f32
    %cst_3 = arith.constant 1.000000e-01 : f32
    %8 = arith.mulf %7, %cst_3 : f32
    %c0 = arith.constant 0 : index
    %c0_4 = arith.constant 0 : index
    %9 = vector.load %arg11[%c0, %c0_4] : memref<128x128xbf16, #tpu.memory_space<vmem>>, vector<128x128xbf16>
    %c0_5 = arith.constant 0 : index
    %c0_6 = arith.constant 0 : index
    %10 = vector.load %arg12[%c0_5, %c0_6] : memref<128x128xbf16, #tpu.memory_space<vmem>>, vector<128x128xbf16>
    %c0_7 = arith.constant 0 : index
    %c0_8 = arith.constant 0 : index
    %11 = vector.load %arg2[%c0_7, %c0_8] : memref<128x128xbf16, #tpu.memory_space<vmem>>, vector<128x128xbf16>
    %cst_9 = arith.constant dense<0.000000e+00> : vector<128x128xf32>
    %12 = tpu.matmul %11, %9, %cst_9 {dimension_numbers = #tpu.dot_dimension_numbers<[1], [0], [0], [1], [0, 0, 1, 1], [], []>} : vector<128x128xbf16>, vector<128x128xbf16>, vector<128x128xf32> -> vector<128x128xf32>
    %13 = vector.broadcast %6 : f32 to vector<128x128xf32>
    %14 = arith.mulf %13, %12 : vector<128x128xf32>
    %15 = arith.truncf %12 : vector<128x128xf32> to vector<128x128xbf16>
    %c0_10 = arith.constant 0 : index
    %c0_11 = arith.constant 0 : index
    %c0_12 = arith.constant 0 : index
    %16 = vector.load %arg6[%c0_10, %c0_11, %c0_12] : memref<1x128x128xbf16, #tpu.memory_space<vmem>>, vector<1x128x128xbf16>
    %17 = vector.shape_cast %16 : vector<1x128x128xbf16> to vector<128x128xbf16>
    %cst_13 = arith.constant dense<0.000000e+00> : vector<128x128xf32>
    %18 = tpu.matmul %15, %17, %cst_13 {dimension_numbers = #tpu.dot_dimension_numbers<[1], [0], [0], [1], [0, 0, 1, 1], [], []>} : vector<128x128xbf16>, vector<128x128xbf16>, vector<128x128xf32> -> vector<128x128xf32>
    %19 = vector.broadcast %4 : f32 to vector<128x128xf32>
    %20 = arith.mulf %19, %18 : vector<128x128xf32>
    %21 = arith.addf %14, %20 : vector<128x128xf32>
    %22 = arith.extf %10 : vector<128x128xbf16> to vector<128x128xf32>
    %23 = vector.broadcast %8 : f32 to vector<128x128xf32>
    %24 = arith.mulf %23, %22 : vector<128x128xf32>
    %c0_14 = arith.constant 0 : index
    %c0_15 = arith.constant 0 : index
    %c0_16 = arith.constant 0 : index
    %25 = vector.load %arg7[%c0_14, %c0_15, %c0_16] : memref<1x128x128xbf16, #tpu.memory_space<vmem>>, vector<1x128x128xbf16>
    %26 = vector.shape_cast %25 : vector<1x128x128xbf16> to vector<128x128xbf16>
    %cst_17 = arith.constant dense<0.000000e+00> : vector<128x128xf32>
    %27 = tpu.matmul %10, %26, %cst_17 {dimension_numbers = #tpu.dot_dimension_numbers<[1], [0], [0], [1], [0, 0, 1, 1], [], []>} : vector<128x128xbf16>, vector<128x128xbf16>, vector<128x128xf32> -> vector<128x128xf32>
    %28 = vector.broadcast %4 : f32 to vector<128x128xf32>
    %29 = arith.mulf %28, %27 : vector<128x128xf32>
    %30 = arith.addf %24, %29 : vector<128x128xf32>
    %31 = arith.addf %21, %30 : vector<128x128xf32>
    %cst_18 = arith.constant 0.000000e+00 : f32
    %32 = vector.broadcast %cst_18 : f32 to vector<128x128xf32>
    %33 = arith.maximumf %31, %32 : vector<128x128xf32>
    %34 = arith.truncf %33 : vector<128x128xf32> to vector<128x128xbf16>
    %c0_19 = arith.constant 0 : index
    %c0_20 = arith.constant 0 : index
    %35 = vector.load %arg11[%c0_19, %c0_20] : memref<128x128xbf16, #tpu.memory_space<vmem>>, vector<128x128xbf16>
    tpu.vector_store %arg11[%c0_19, %c0_20], %34 {strides = array<i32>} : memref<128x128xbf16, #tpu.memory_space<vmem>>, vector<128x128xbf16>,
    %c3_i32 = arith.constant 3 : i32
    %36 = arith.cmpi eq, %arg0, %c3_i32 : i32
    %37 = arith.extui %36 : i1 to i32
    %c0_i32_21 = arith.constant 0 : i32
    %38 = arith.cmpi ne, %37, %c0_i32_21 : i32
    scf.if %38 {
      %c0_22 = arith.constant 0 : index
      %c0_23 = arith.constant 0 : index
      %39 = vector.load %arg8[%c0_22, %c0_23] : memref<128x128xbf16, #tpu.memory_space<vmem>>, vector<128x128xbf16>
      %cst_24 = arith.constant dense<0.000000e+00> : vector<128x128xf32>
      %40 = tpu.matmul %34, %39, %cst_24 {dimension_numbers = #tpu.dot_dimension_numbers<[1], [0], [0], [1], [0, 0, 1, 1], [], []>} : vector<128x128xbf16>, vector<128x128xbf16>, vector<128x128xf32> -> vector<128x128xf32>
      %c0_25 = arith.constant 0 : index
      %c0_26 = arith.constant 0 : index
      %41 = vector.load %arg9[%c0_25, %c0_26] : memref<1x128xf32, #tpu.memory_space<vmem>>, vector<1x128xf32>
      %42 = vector.broadcast %41 : vector<1x128xf32> to vector<128x128xf32>
      %43 = arith.addf %40, %42 : vector<128x128xf32>
      %c0_27 = arith.constant 0 : index
      %c0_28 = arith.constant 0 : index
      %44 = vector.load %arg10[%c0_27, %c0_28] : memref<128x128xf32, #tpu.memory_space<vmem>>, vector<128x128xf32>
      tpu.vector_store %arg10[%c0_27, %c0_28], %43 {strides = array<i32>} : memref<128x128xf32, #tpu.memory_space<vmem>>, vector<128x128xf32>,
    } else {
    }
    return
  }
  func.func @transform_0(%arg0: i32, %arg1: memref<4xf32, #tpu.memory_space<smem>>) -> (i32, i32) {
    %c0_i32 = arith.constant 0 : i32
    %c0_i32_0 = arith.constant 0 : i32
    %c0_i32_1 = arith.constant 0 : i32
    return %c0_i32, %c0_i32_0 : i32, i32
  }
  func.func @transform_1(%arg0: i32, %arg1: memref<4xf32, #tpu.memory_space<smem>>) -> (i32, i32) {
    %c0_i32 = arith.constant 0 : i32
    %c0_i32_0 = arith.constant 0 : i32
    %c0_i32_1 = arith.constant 0 : i32
    return %c0_i32, %c0_i32_0 : i32, i32
  }
  func.func @transform_2(%arg0: i32, %arg1: memref<4xf32, #tpu.memory_space<smem>>) -> (i32, i32) {
    %c0_i32 = arith.constant 0 : i32
    %c0_i32_0 = arith.constant 0 : i32
    %c0_i32_1 = arith.constant 0 : i32
    return %c0_i32, %c0_i32_0 : i32, i32
  }
  func.func @transform_3(%arg0: i32, %arg1: memref<4xf32, #tpu.memory_space<smem>>) -> (i32, i32) {
    %c0_i32 = arith.constant 0 : i32
    %c0_i32_0 = arith.constant 0 : i32
    %c0_i32_1 = arith.constant 0 : i32
    return %c0_i32, %c0_i32_0 : i32, i32
  }
  func.func @transform_4(%arg0: i32, %arg1: memref<4xf32, #tpu.memory_space<smem>>) -> (i32, i32, i32) {
    %c0_i32 = arith.constant 0 : i32
    %c0_i32_0 = arith.constant 0 : i32
    %c0_i32_1 = arith.constant 0 : i32
    return %arg0, %c0_i32, %c0_i32_0 : i32, i32, i32
  }
  func.func @transform_5(%arg0: i32, %arg1: memref<4xf32, #tpu.memory_space<smem>>) -> (i32, i32, i32) {
    %c0_i32 = arith.constant 0 : i32
    %c0_i32_0 = arith.constant 0 : i32
    %c0_i32_1 = arith.constant 0 : i32
    return %arg0, %c0_i32, %c0_i32_0 : i32, i32, i32
  }
  func.func @transform_6(%arg0: i32, %arg1: memref<4xf32, #tpu.memory_space<smem>>) -> (i32, i32) {
    %c0_i32 = arith.constant 0 : i32
    %c0_i32_0 = arith.constant 0 : i32
    %c0_i32_1 = arith.constant 0 : i32
    return %c0_i32, %c0_i32_0 : i32, i32
  }
  func.func @transform_7(%arg0: i32, %arg1: memref<4xf32, #tpu.memory_space<smem>>) -> (i32, i32) {
    %c0_i32 = arith.constant 0 : i32
    %c0_i32_0 = arith.constant 0 : i32
    %c0_i32_1 = arith.constant 0 : i32
    return %c0_i32, %c0_i32_0 : i32, i32
  }
  func.func @transform_8(%arg0: i32, %arg1: memref<4xf32, #tpu.memory_space<smem>>) -> (i32, i32) {
    %c0_i32 = arith.constant 0 : i32
    %c0_i32_0 = arith.constant 0 : i32
    %c0_i32_1 = arith.constant 0 : i32
    return %c0_i32, %c0_i32_0 : i32, i32
  }
}

</mosaic_0001>

<llo_original>
// kernel: tpu_custom_call.1
$region0: #{tpu_custom_call.1}
  #allocation0 [shape = 'u32[]', space=smem, size = 0x4, offset = 0x4, fixed_abs, tag = 'smem constant byte address 0x4 - core index']
  #allocation1 [shape = 'u32[144,128]{1,0:T(1,128)}', space=vmem, size = 0x12000, scoped, tag = 'internal scratch']
  #allocation2 [shape = 'bf16[128,128]{1,0:T(16,128)(2,1)}', space=vmem, size = 0x8000, scoped, tag = 'scratch operand']
  #allocation3 [shape = 'bf16[128,128]{1,0:T(16,128)(2,1)}', space=vmem, size = 0x8000, scoped, tag = 'scratch operand']
  #allocation4 [shape = 's32[1]{0}', space=sflag, size = 0x4, scoped, tag = 'scoped memory for tpu_custom_call.1']
  #allocation5 [shape = 'u8[512]{0}', space=smem, size = 0x200, scoped, tag = 'prefetched SMEM operand 0']
  %s0 = inlined_call_operand.hbm [shape: f32[4], index: 0, kind: input, shape index: {}]
  %s1 = inlined_call_operand.hbm [shape: bf16[128,128], index: 1, kind: input, shape index: {}]
  %s2 = inlined_call_operand.hbm [shape: bf16[128,128], index: 2, kind: input, shape index: {}]
  %s3 = inlined_call_operand.hbm [shape: bf16[128,128], index: 3, kind: input, shape index: {}]
  %s4 = inlined_call_operand.vmem [shape: f32[1,128], index: 4, kind: input, shape index: {}]
  %s5 = inlined_call_operand.hbm [shape: bf16[4,128,128], index: 5, kind: input, shape index: {}]
  %s6 = inlined_call_operand.hbm [shape: bf16[4,128,128], index: 6, kind: input, shape index: {}]
  %s7 = inlined_call_operand.hbm [shape: bf16[128,128], index: 7, kind: input, shape index: {}]
  %s8 = inlined_call_operand.vmem [shape: f32[1,128], index: 8, kind: input, shape index: {}]
  %s9 = inlined_call_operand.hbm [shape: f32[128,128], index: 9, kind: output, shape index: {}]
  %s10 = sld [smem:[#allocation0]]
  $region97: #{tpu_custom_call.1} parent=0
    _
  %s12 = ssub.s32 1, %s10
  %s13 = scalar_select 0, %s12, %s10
  %15 = dma.hbm_to_smem %s0, 16, [#allocation5], [#allocation4]
  %16 = dma.done [#allocation4], 16
  %17 = sfence
  $region1: #{tpu_custom_call.1} parent=0
    #allocation6 [shape = 'u8[32768]{0}', space=vmem, size = 0x8000, scoped, tag = 'input window, operand 1, single buffered']
    #allocation7 [shape = 's32[2]{0}', space=sflag, size = 0x8, scoped, tag = 'scoped memory for tpu_custom_call.1']
    #allocation8 [shape = 's32[2]{0}', space=sflag, size = 0x8, scoped, tag = 'scoped memory for tpu_custom_call.1']
    #allocation9 [shape = 'u8[32768]{0}', space=vmem, size = 0x8000, scoped, tag = 'input window, operand 2, single buffered']
    #allocation10 [shape = 's32[1]{0}', space=sflag, size = 0x4, scoped, tag = 'scoped memory for tpu_custom_call.1']
    #allocation11 [shape = 'u8[32768]{0}', space=vmem, size = 0x8000, scoped, tag = 'input window, operand 3, single buffered']
    #allocation12 [shape = 'u8[65536]{0}', space=vmem, size = 0x10000, scoped, tag = 'input window, operand 5']
    #allocation13 [shape = 's32[2]{0}', space=sflag, size = 0x8, scoped, tag = 'scoped memory for tpu_custom_call.1']
    #allocation14 [shape = 'u8[65536]{0}', space=vmem, size = 0x10000, scoped, tag = 'input window, operand 6']
    #allocation15 [shape = 'u8[32768]{0}', space=vmem, size = 0x8000, scoped, tag = 'input window, operand 7, single buffered']
    #allocation16 [shape = 's32[1]{0}', space=sflag, size = 0x4, scoped, tag = 'scoped memory for tpu_custom_call.1']
    #allocation17 [shape = 'u8[65536]{0}', space=vmem, size = 0x10000, scoped, tag = 'output window, operand 0, single buffered']
    %18 = vsyncpa [#allocation7], 0
    %19 = vsyncpa [#allocation10], 0
    %20 = vsyncpa [#allocation13], 0
    %s21 = scalar_lea.sflag [#allocation13], 1
    %22 = vsyncpa %s21, 0
    %23 = vsyncpa [#allocation16], 0
    %24 = vsyncpa [#allocation8], 0
    loop: start=0, step=1, limit=6
    $region2: #{tpu_custom_call.1} parent=1 // loop_pre_header
      _
    $region3: #{tpu_custom_call.1} parent=1 // loop_header
      %s26 = sphi 0, %s30
      %p27 = scmp.ge.s32.totalorder %s26, 6
      %s34 = sphi 0, %s34
      %s36 = sphi 0, %s34
      %s37 = sphi 0, %s36
      %s51 = sphi 0, %s37
      %s55 = sphi 0, %s55
      %s57 = sphi 0, %s55
      %s58 = sphi 0, %s57
      %s72 = sphi 0, %s58
      %s76 = sphi 0, %s76
      %s78 = sphi 0, %s76
      %s79 = sphi 0, %s78
      %s93 = sphi 0, %s79
      %s97 = sphi 0, %s97
      %s99 = sphi 0, %s97
      %s100 = sphi 0, %s99
      %s114 = sphi 0, %s100
      %s120 = sphi 0, %s122
      %s123 = sphi 0, %s120
      %s124 = sphi 0, %s123
      %s140 = sphi 0, %s124
      %s146 = sphi 0, %s148
      %s149 = sphi 0, %s146
      %s150 = sphi 0, %s149
      %s166 = sphi 0, %s150
      %s170 = sphi 0, %s170
      %s172 = sphi 0, %s170
      %s173 = sphi 0, %s172
      %s187 = sphi 0, %s173
      %s191 = sphi 0, %s191
      %s193 = sphi 0, %s191
      %s194 = sphi 0, %s193
      %s208 = sphi 0, %s194
      %s212 = sphi 0, %s212
      %s214 = sphi 0, %s212
      %s215 = sphi 0, %s214
      %s229 = sphi 0, %s215
    $region4: #{tpu_custom_call.1} parent=1 // loop_header_branch
      %29 = sbr.rel (%p27) target = $region8
    $region5: #{tpu_custom_call.1} parent=1 // loop_body
      %s31 = ssub.s32 %s26, 1
      %s32 = ssub.s32 %s26, 2
      %s33 = sadd.s32 %s26, 1
      %s35 = sadd.s32 %s34, 1
      %p38 = scmp.eq.s32.totalorder %s26, 3
      %p39 = scmp.ne.s32.totalorder %s34, %s36
      %p40 = scmp.eq.s32.totalorder %s26, 0
      %p41 = por %p39, %p40
      %p42 = scmp.ne.s32.totalorder %s34, %s36
      %p43 = scmp.eq.s32.totalorder %s31, 3
      %p44 = por %p42, %p43
      %p45 = scmp.ne.s32.totalorder %s36, %s37
      %p46 = scmp.eq.s32.totalorder %s31, 0
      %p47 = por %p45, %p46
      %p48 = scmp.ne.s32.totalorder %s36, %s37
      %p49 = scmp.eq.s32.totalorder %s32, 3
      %p50 = por %p48, %p49
      %p52 = scmp.ne.s32.totalorder %s37, %s51
      %p53 = scmp.eq.s32.totalorder %s32, 0
      %p54 = por %p52, %p53
      %s56 = sadd.s32 %s55, 1
      %p59 = scmp.eq.s32.totalorder %s26, 3
      %p60 = scmp.ne.s32.totalorder %s55, %s57
      %p61 = scmp.eq.s32.totalorder %s26, 0
      %p62 = por %p60, %p61
      %p63 = scmp.ne.s32.totalorder %s55, %s57
      %p64 = scmp.eq.s32.totalorder %s31, 3
      %p65 = por %p63, %p64
      %p66 = scmp.ne.s32.totalorder %s57, %s58
      %p67 = scmp.eq.s32.totalorder %s31, 0
      %p68 = por %p66, %p67
      %p69 = scmp.ne.s32.totalorder %s57, %s58
      %p70 = scmp.eq.s32.totalorder %s32, 3
      %p71 = por %p69, %p70
      %p73 = scmp.ne.s32.totalorder %s58, %s72
      %p74 = scmp.eq.s32.totalorder %s32, 0
      %p75 = por %p73, %p74
      %s77 = sadd.s32 %s76, 1
      %p80 = scmp.eq.s32.totalorder %s26, 3
      %p81 = scmp.ne.s32.totalorder %s76, %s78
      %p82 = scmp.eq.s32.totalorder %s26, 0
      %p83 = por %p81, %p82
      %p84 = scmp.ne.s32.totalorder %s76, %s78
      %p85 = scmp.eq.s32.totalorder %s31, 3
      %p86 = por %p84, %p85
      %p87 = scmp.ne.s32.totalorder %s78, %s79
      %p88 = scmp.eq.s32.totalorder %s31, 0
      %p89 = por %p87, %p88
      %p90 = scmp.ne.s32.totalorder %s78, %s79
      %p91 = scmp.eq.s32.totalorder %s32, 3
      %p92 = por %p90, %p91
      %p94 = scmp.ne.s32.totalorder %s79, %s93
      %p95 = scmp.eq.s32.totalorder %s32, 0
      %p96 = por %p94, %p95
      %s98 = sadd.s32 %s97, 1
      %p101 = scmp.eq.s32.totalorder %s26, 3
      %p102 = scmp.ne.s32.totalorder %s97, %s99
      %p103 = scmp.eq.s32.totalorder %s26, 0
      %p104 = por %p102, %p103
      %p105 = scmp.ne.s32.totalorder %s97, %s99
      %p106 = scmp.eq.s32.totalorder %s31, 3
      %p107 = por %p105, %p106
      %p108 = scmp.ne.s32.totalorder %s99, %s100
      %p109 = scmp.eq.s32.totalorder %s31, 0
      %p110 = por %p108, %p109
      %p111 = scmp.ne.s32.totalorder %s99, %s100
      %p112 = scmp.eq.s32.totalorder %s32, 3
      %p113 = por %p111, %p112
      %p115 = scmp.ne.s32.totalorder %s100, %s114
      %p116 = scmp.eq.s32.totalorder %s32, 0
      %p117 = por %p115, %p116
      %s118 = ssub.s32 %s26, %s33
      %p119 = scmp.eq.s32.totalorder %s118, 0
      %s121 = sadd.s32 %s120, 1
      %s122 = scalar_select %p119, %s120, %s121
      %p125 = pneg %p119
      %p126 = scmp.eq.s32.totalorder %s26, 3
      %p127 = por %p125, %p126
      %p128 = scmp.ne.s32.totalorder %s120, %s123
      %p129 = scmp.eq.s32.totalorder %s26, 0
      %p130 = por %p128, %p129
      %p131 = scmp.ne.s32.totalorder %s120, %s123
      %p132 = scmp.eq.s32.totalorder %s31, 3
      %p133 = por %p131, %p132
      %p134 = scmp.ne.s32.totalorder %s123, %s124
      %p135 = scmp.eq.s32.totalorder %s31, 0
      %p136 = por %p134, %p135
      %p137 = scmp.ne.s32.totalorder %s123, %s124
      %p138 = scmp.eq.s32.totalorder %s32, 3
      %p139 = por %p137, %p138
      %p141 = scmp.ne.s32.totalorder %s124, %s140
      %p142 = scmp.eq.s32.totalorder %s32, 0
      %p143 = por %p141, %p142
      %s144 = ssub.s32 %s26, %s33
      %p145 = scmp.eq.s32.totalorder %s144, 0
      %s147 = sadd.s32 %s146, 1
      %s148 = scalar_select %p145, %s146, %s147
      %p151 = pneg %p145
      %p152 = scmp.eq.s32.totalorder %s26, 3
      %p153 = por %p151, %p152
      %p154 = scmp.ne.s32.totalorder %s146, %s149
      %p155 = scmp.eq.s32.totalorder %s26, 0
      %p156 = por %p154, %p155
      %p157 = scmp.ne.s32.totalorder %s146, %s149
      %p158 = scmp.eq.s32.totalorder %s31, 3
      %p159 = por %p157, %p158
      %p160 = scmp.ne.s32.totalorder %s149, %s150
      %p161 = scmp.eq.s32.totalorder %s31, 0
      %p162 = por %p160, %p161
      %p163 = scmp.ne.s32.totalorder %s149, %s150
      %p164 = scmp.eq.s32.totalorder %s32, 3
      %p165 = por %p163, %p164
      %p167 = scmp.ne.s32.totalorder %s150, %s166
      %p168 = scmp.eq.s32.totalorder %s32, 0
      %p169 = por %p167, %p168
      %s171 = sadd.s32 %s170, 1
      %p174 = scmp.eq.s32.totalorder %s26, 3
      %p175 = scmp.ne.s32.totalorder %s170, %s172
      %p176 = scmp.eq.s32.totalorder %s26, 0
      %p177 = por %p175, %p176
      %p178 = scmp.ne.s32.totalorder %s170, %s172
      %p179 = scmp.eq.s32.totalorder %s31, 3
      %p180 = por %p178, %p179
      %p181 = scmp.ne.s32.totalorder %s172, %s173
      %p182 = scmp.eq.s32.totalorder %s31, 0
      %p183 = por %p181, %p182
      %p184 = scmp.ne.s32.totalorder %s172, %s173
      %p185 = scmp.eq.s32.totalorder %s32, 3
      %p186 = por %p184, %p185
      %p188 = scmp.ne.s32.totalorder %s173, %s187
      %p189 = scmp.eq.s32.totalorder %s32, 0
      %p190 = por %p188, %p189
      %s192 = sadd.s32 %s191, 1
      %p195 = scmp.eq.s32.totalorder %s26, 3
      %p196 = scmp.ne.s32.totalorder %s191, %s193
      %p197 = scmp.eq.s32.totalorder %s26, 0
      %p198 = por %p196, %p197
      %p199 = scmp.ne.s32.totalorder %s191, %s193
      %p200 = scmp.eq.s32.totalorder %s31, 3
      %p201 = por %p199, %p200
      %p202 = scmp.ne.s32.totalorder %s193, %s194
      %p203 = scmp.eq.s32.totalorder %s31, 0
      %p204 = por %p202, %p203
      %p205 = scmp.ne.s32.totalorder %s193, %s194
      %p206 = scmp.eq.s32.totalorder %s32, 3
      %p207 = por %p205, %p206
      %p209 = scmp.ne.s32.totalorder %s194, %s208
      %p210 = scmp.eq.s32.totalorder %s32, 0
      %p211 = por %p209, %p210
      %s213 = sadd.s32 %s212, 1
      %p216 = scmp.eq.s32.totalorder %s26, 3
      %p217 = scmp.ne.s32.totalorder %s212, %s214
      %p218 = scmp.eq.s32.totalorder %s26, 0
      %p219 = por %p217, %p218
      %p220 = scmp.ne.s32.totalorder %s212, %s214
      %p221 = scmp.eq.s32.totalorder %s31, 3
      %p222 = por %p220, %p221
      %p223 = scmp.ne.s32.totalorder %s214, %s215
      %p224 = scmp.eq.s32.totalorder %s31, 0
      %p225 = por %p223, %p224
      %p226 = scmp.ne.s32.totalorder %s214, %s215
      %p227 = scmp.eq.s32.totalorder %s32, 3
      %p228 = por %p226, %p227
      %p230 = scmp.ne.s32.totalorder %s215, %s229
      %p231 = scmp.eq.s32.totalorder %s32, 0
      %p232 = por %p230, %p231
      %p233 = scmp.le.s32.totalorder 1, %s26
      %p234 = scmp.lt.s32.totalorder %s26, 5
      %p235 = pnand %p233, %p234
      %p236 = pneg %p235
      // Predicated region
      $region9: #{tpu_custom_call.1} parent=5 // pred_check
        _
      $region10: #{tpu_custom_call.1} parent=5 // pred_check_branch
        %238 = sbr.rel (%p235) target = $region12
      $region11: #{tpu_custom_call.1} parent=5 // pred_region
        %s239 = ssub.s32 %s26, 1
        // Predicated region
        $region13: #{tpu_custom_call.1} parent=11 // pred_check
          %p240 = pneg %p47
        $region14: #{tpu_custom_call.1} parent=11 // pred_check_branch
          %242 = sbr.rel (%p240) target = $region16
        $region15: #{tpu_custom_call.1} parent=11 // pred_region
          %s244 = ssub.s32 1024, 1024
          %245 = vsyncadd [#allocation7], %s244
          %s246 = sshll.u32 [#allocation6], 4
          %s247 = int_to_ptr.vmem [resolvable:$true] %s246
          %252 = dma.hbm_to_vmem [thread:$0]  %s1, 1024, %s247, [#allocation7], 64, 64, 4
        $region16: #{tpu_custom_call.1} parent=11 // pred_fallthru
          _
        // Predicated region
        $region17: #{tpu_custom_call.1} parent=11 // pred_check
          %p253 = pneg %p68
        $region18: #{tpu_custom_call.1} parent=11 // pred_check_branch
          %255 = sbr.rel (%p253) target = $region20
        $region19: #{tpu_custom_call.1} parent=11 // pred_region
          %s257 = ssub.s32 1024, 1024
          %258 = vsyncadd [#allocation10], %s257
          %s259 = sshll.u32 [#allocation9], 4
          %s260 = int_to_ptr.vmem [resolvable:$true] %s259
          %265 = dma.hbm_to_vmem [thread:$0]  %s2, 1024, %s260, [#allocation10], 64, 64, 4
        $region20: #{tpu_custom_call.1} parent=11 // pred_fallthru
          _
        // Predicated region
        $region21: #{tpu_custom_call.1} parent=11 // pred_check
          %p266 = pneg %p89
        $region22: #{tpu_custom_call.1} parent=11 // pred_check_branch
          %268 = sbr.rel (%p266) target = $region24
        $region23: #{tpu_custom_call.1} parent=11 // pred_region
          %s270 = ssub.s32 1024, 1024
          %271 = vsyncadd [#allocation10], %s270
          %s272 = sshll.u32 [#allocation11], 4
          %s273 = int_to_ptr.vmem [resolvable:$true] %s272
          %278 = dma.hbm_to_vmem [thread:$0]  %s3, 1024, %s273, [#allocation10], 64, 64, 4
        $region24: #{tpu_custom_call.1} parent=11 // pred_fallthru
          _
        // Predicated region
        $region25: #{tpu_custom_call.1} parent=11 // pred_check
          %p279 = pneg %p110
        $region26: #{tpu_custom_call.1} parent=11 // pred_check_branch
          %281 = sbr.rel (%p279) target = $region28
        $region27: #{tpu_custom_call.1} parent=11 // pred_region
          _
        $region28: #{tpu_custom_call.1} parent=11 // pred_fallthru
          _
        // Predicated region
        $region29: #{tpu_custom_call.1} parent=11 // pred_check
          %p282 = pneg %p183
        $region30: #{tpu_custom_call.1} parent=11 // pred_check_branch
          %284 = sbr.rel (%p282) target = $region32
        $region31: #{tpu_custom_call.1} parent=11 // pred_region
          %s286 = ssub.s32 1024, 1024
          %287 = vsyncadd [#allocation16], %s286
          %s288 = sshll.u32 [#allocation15], 4
          %s289 = int_to_ptr.vmem [resolvable:$true] %s288
          %294 = dma.hbm_to_vmem [thread:$0]  %s7, 1024, %s289, [#allocation16], 64, 64, 4
        $region32: #{tpu_custom_call.1} parent=11 // pred_fallthru
          _
        // Predicated region
        $region33: #{tpu_custom_call.1} parent=11 // pred_check
          %p295 = pneg %p204
        $region34: #{tpu_custom_call.1} parent=11 // pred_check_branch
          %297 = sbr.rel (%p295) target = $region36
        $region35: #{tpu_custom_call.1} parent=11 // pred_region
          _
        $region36: #{tpu_custom_call.1} parent=11 // pred_fallthru
          _
      $region12: #{tpu_custom_call.1} parent=5 // pred_fallthru
        _
      %p298 = scmp.lt.s32.totalorder %s26, 4
      // Predicated region
      $region37: #{tpu_custom_call.1} parent=5 // pred_check
        %p299 = pneg %p298
      $region38: #{tpu_custom_call.1} parent=5 // pred_check_branch
        %301 = sbr.rel (%p299) target = $region40
      $region39: #{tpu_custom_call.1} parent=5 // pred_region
        // Predicated region
        $region41: #{tpu_custom_call.1} parent=39 // pred_check
          %p302 = pneg %p130
        $region42: #{tpu_custom_call.1} parent=39 // pred_check_branch
          %304 = sbr.rel (%p302) target = $region44
        $region43: #{tpu_custom_call.1} parent=39 // pred_region
          %s305 = sand.u32 %s26, 1
          %s306 = scalar_lea.sflag [#allocation13], %s305
          %s307 = sand.u32 %s120, 1
          %s308 = smul.addr %s307, 64
          %s309 = scalar_lea.vmem [#allocation12], %s308
          %s311 = ssub.s32 1024, 1024
          %312 = vsyncadd %s306, %s311
          %s313 = smul.addr %s26, 16
          %s314 = smul.addr %s313, 64
          %s315 = scalar_lea.hbm %s5, %s314
          %s316 = sshll.u32 %s309, 4
          %s317 = int_to_ptr.vmem [resolvable:$true] %s316
          %322 = dma.hbm_to_vmem [thread:$0]  %s315, 1024, %s317, %s306, 64, 64, 4
        $region44: #{tpu_custom_call.1} parent=39 // pred_fallthru
          _
        // Predicated region
        $region45: #{tpu_custom_call.1} parent=39 // pred_check
          %p323 = pneg %p156
        $region46: #{tpu_custom_call.1} parent=39 // pred_check_branch
          %325 = sbr.rel (%p323) target = $region48
        $region47: #{tpu_custom_call.1} parent=39 // pred_region
          %s326 = sand.u32 %s26, 1
          %s327 = scalar_lea.sflag [#allocation13], %s326
          %s328 = sand.u32 %s146, 1
          %s329 = smul.addr %s328, 64
          %s330 = scalar_lea.vmem [#allocation14], %s329
          %s332 = ssub.s32 1024, 1024
          %333 = vsyncadd %s327, %s332
          %s334 = smul.addr %s26, 16
          %s335 = smul.addr %s334, 64
          %s336 = scalar_lea.hbm %s6, %s335
          %s337 = sshll.u32 %s330, 4
          %s338 = int_to_ptr.vmem [resolvable:$true] %s337
          %343 = dma.hbm_to_vmem [thread:$0]  %s336, 1024, %s338, %s327, 64, 64, 4
        $region48: #{tpu_custom_call.1} parent=39 // pred_fallthru
          _
      $region40: #{tpu_custom_call.1} parent=5 // pred_fallthru
        _
      %p344 = scmp.le.s32.totalorder 1, %s26
      %p345 = scmp.lt.s32.totalorder %s26, 5
      %p346 = pnand %p344, %p345
      %p347 = pneg %p346
      // Predicated region
      $region49: #{tpu_custom_call.1} parent=5 // pred_check
        _
      $region50: #{tpu_custom_call.1} parent=5 // pred_check_branch
        %349 = sbr.rel (%p346) target = $region52
      $region51: #{tpu_custom_call.1} parent=5 // pred_region
        %s350 = ssub.s32 %s26, 1
        // Predicated region
        $region53: #{tpu_custom_call.1} parent=51 // pred_check
          %p351 = pneg %p47
        $region54: #{tpu_custom_call.1} parent=51 // pred_check_branch
          %353 = sbr.rel (%p351) target = $region56
        $region55: #{tpu_custom_call.1} parent=51 // pred_region
          %354 = dma.done [#allocation7], 1024
        $region56: #{tpu_custom_call.1} parent=51 // pred_fallthru
          _
        // Predicated region
        $region57: #{tpu_custom_call.1} parent=51 // pred_check
          %p355 = pneg %p68
        $region58: #{tpu_custom_call.1} parent=51 // pred_check_branch
          %357 = sbr.rel (%p355) target = $region60
        $region59: #{tpu_custom_call.1} parent=51 // pred_region
          %358 = dma.done [#allocation10], 1024
        $region60: #{tpu_custom_call.1} parent=51 // pred_fallthru
          _
        // Predicated region
        $region61: #{tpu_custom_call.1} parent=51 // pred_check
          %p359 = pneg %p89
        $region62: #{tpu_custom_call.1} parent=51 // pred_check_branch
          %361 = sbr.rel (%p359) target = $region64
        $region63: #{tpu_custom_call.1} parent=51 // pred_region
          %362 = dma.done [#allocation10], 1024
        $region64: #{tpu_custom_call.1} parent=51 // pred_fallthru
          _
        %s363 = sand.u32 %s31, 1
        %s364 = scalar_lea.sflag [#allocation13], %s363
        %s365 = sand.u32 %s123, 1
        %s366 = smul.addr %s365, 64
        %s367 = scalar_lea.vmem [#allocation12], %s366
        // Predicated region
        $region65: #{tpu_custom_call.1} parent=51 // pred_check
          %p368 = pneg %p136
        $region66: #{tpu_custom_call.1} parent=51 // pred_check_branch
          %370 = sbr.rel (%p368) target = $region68
        $region67: #{tpu_custom_call.1} parent=51 // pred_region
          %371 = dma.done %s364, 1024
        $region68: #{tpu_custom_call.1} parent=51 // pred_fallthru
          _
        %s372 = sand.u32 %s31, 1
        %s373 = scalar_lea.sflag [#allocation13], %s372
        %s374 = sand.u32 %s149, 1
        %s375 = smul.addr %s374, 64
        %s376 = scalar_lea.vmem [#allocation14], %s375
        // Predicated region
        $region69: #{tpu_custom_call.1} parent=51 // pred_check
          %p377 = pneg %p162
        $region70: #{tpu_custom_call.1} parent=51 // pred_check_branch
          %379 = sbr.rel (%p377) target = $region72
        $region71: #{tpu_custom_call.1} parent=51 // pred_region
          %380 = dma.done %s373, 1024
        $region72: #{tpu_custom_call.1} parent=51 // pred_fallthru
          _
        // Predicated region
        $region73: #{tpu_custom_call.1} parent=51 // pred_check
          %p381 = pneg %p183
        $region74: #{tpu_custom_call.1} parent=51 // pred_check_branch
          %383 = sbr.rel (%p381) target = $region76
        $region75: #{tpu_custom_call.1} parent=51 // pred_region
          %384 = dma.done [#allocation16], 1024
        $region76: #{tpu_custom_call.1} parent=51 // pred_fallthru
          _
        %p385 = pneg %p47
        %p386 = pneg %p44
        %p387 = pneg %p68
        %p388 = pneg %p65
        %p389 = pneg %p89
        %p390 = pneg %p86
        %p391 = pneg %p110
        %p392 = pneg %p107
        %s393 = sand.u32 %s31, 1
        %s394 = scalar_lea.sflag [#allocation13], %s393
        %s395 = sand.u32 %s123, 1
        %s396 = smul.addr %s395, 64
        %s397 = scalar_lea.vmem [#allocation12], %s396
        %p398 = pneg %p136
        %p399 = pneg %p133
        %s400 = sand.u32 %s31, 1
        %s401 = scalar_lea.sflag [#allocation13], %s400
        %s402 = sand.u32 %s149, 1
        %s403 = smul.addr %s402, 64
        %s404 = scalar_lea.vmem [#allocation14], %s403
        %p405 = pneg %p162
        %p406 = pneg %p159
        %p407 = pneg %p183
        %p408 = pneg %p180
        %p409 = pneg %p204
        %p410 = pneg %p201
        %p411 = pneg %p225
        %p412 = pneg %p222
        %p414 = scmp.eq.s32.totalorder %s31, 0
        // Predicated region
        $region77: #{tpu_custom_call.1} parent=51 // pred_check
          %p415 = pneg %p414
        $region78: #{tpu_custom_call.1} parent=51 // pred_check_branch
          %417 = sbr.rel (%p415) target = $region80
        $region79: #{tpu_custom_call.1} parent=51 // pred_region
          %v418 = vld [vmem:[#allocation9] sm:$0xf]
          %v419 = vld [vmem:[#allocation9 + $0x4] sm:$0xf]
          %v420 = vld [vmem:[#allocation9 + $0x8] sm:$0xf]
          %v421 = vld [vmem:[#allocation9 + $0xc] sm:$0xf]
          %v422 = vld [vmem:[#allocation9 + $0x10] sm:$0xf]
          %v423 = vld [vmem:[#allocation9 + $0x14] sm:$0xf]
          %v424 = vld [vmem:[#allocation9 + $0x18] sm:$0xf]
          %v425 = vld [vmem:[#allocation9 + $0x1c] sm:$0xf]
          %v426 = vld [vmem:[#allocation9 + $0x20] sm:$0xf]
          %v427 = vld [vmem:[#allocation9 + $0x24] sm:$0xf]
          %v428 = vld [vmem:[#allocation9 + $0x28] sm:$0xf]
          %v429 = vld [vmem:[#allocation9 + $0x2c] sm:$0xf]
          %v430 = vld [vmem:[#allocation9 + $0x30] sm:$0xf]
          %v431 = vld [vmem:[#allocation9 + $0x34] sm:$0xf]
          %v432 = vld [vmem:[#allocation9 + $0x38] sm:$0xf]
          %v433 = vld [vmem:[#allocation9 + $0x3c] sm:$0xf]
          %v434 = vld [vmem:[#allocation11] sm:$0xf]
          %v435 = vld [vmem:[#allocation11 + $0x4] sm:$0xf]
          %v436 = vld [vmem:[#allocation11 + $0x8] sm:$0xf]
          %v437 = vld [vmem:[#allocation11 + $0xc] sm:$0xf]
          %v438 = vld [vmem:[#allocation11 + $0x10] sm:$0xf]
          %v439 = vld [vmem:[#allocation11 + $0x14] sm:$0xf]
          %v440 = vld [vmem:[#allocation11 + $0x18] sm:$0xf]
          %v441 = vld [vmem:[#allocation11 + $0x1c] sm:$0xf]
          %v442 = vld [vmem:[#allocation11 + $0x20] sm:$0xf]
          %v443 = vld [vmem:[#allocation11 + $0x24] sm:$0xf]
          %v444 = vld [vmem:[#allocation11 + $0x28] sm:$0xf]
          %v445 = vld [vmem:[#allocation11 + $0x2c] sm:$0xf]
          %v446 = vld [vmem:[#allocation11 + $0x30] sm:$0xf]
          %v447 = vld [vmem:[#allocation11 + $0x34] sm:$0xf]
          %v448 = vld [vmem:[#allocation11 + $0x38] sm:$0xf]
          %v449 = vld [vmem:[#allocation11 + $0x3c] sm:$0xf]
          %v450 = vld [vmem:[%s4] sm:$0x1]
          %v452 = vlaneseq
          %v453 = vshrl.u32 %v452, 7
          %v454 = vsub.s32 0, %v453
          %v455 = vrot.slane %v450, %v454
          %v473 = vunpack.c.l.b16 %v418
          %v474 = vunpack.c.l.b16 %v419
          %v475 = vunpack.c.l.b16 %v420
          %v476 = vunpack.c.l.b16 %v421
          %v477 = vunpack.c.l.b16 %v422
          %v478 = vunpack.c.l.b16 %v423
          %v479 = vunpack.c.l.b16 %v424
          %v480 = vunpack.c.l.b16 %v425
          %v481 = vunpack.c.l.b16 %v426
          %v482 = vunpack.c.l.b16 %v427
          %v483 = vunpack.c.l.b16 %v428
          %v484 = vunpack.c.l.b16 %v429
          %v485 = vunpack.c.l.b16 %v430
          %v486 = vunpack.c.l.b16 %v431
          %v487 = vunpack.c.l.b16 %v432
          %v488 = vunpack.c.l.b16 %v433
          %v489 = vpack.c.b16 %v474, %v473
          %v490 = vpack.c.b16 %v476, %v475
          %v491 = vpack.c.b16 %v478, %v477
          %v492 = vpack.c.b16 %v480, %v479
          %v493 = vpack.c.b16 %v482, %v481
          %v494 = vpack.c.b16 %v484, %v483
          %v495 = vpack.c.b16 %v486, %v485
          %v496 = vpack.c.b16 %v488, %v487
          %v521 = vunpack.c.l.b16 %v434
          %v522 = vunpack.c.l.b16 %v435
          %v523 = vunpack.c.l.b16 %v436
          %v524 = vunpack.c.l.b16 %v437
          %v525 = vunpack.c.l.b16 %v438
          %v526 = vunpack.c.l.b16 %v439
          %v527 = vunpack.c.l.b16 %v440
          %v528 = vunpack.c.l.b16 %v441
          %v529 = vunpack.c.l.b16 %v442
          %v530 = vunpack.c.l.b16 %v443
          %v531 = vunpack.c.l.b16 %v444
          %v532 = vunpack.c.l.b16 %v445
          %v533 = vunpack.c.l.b16 %v446
          %v534 = vunpack.c.l.b16 %v447
          %v535 = vunpack.c.l.b16 %v448
          %v536 = vunpack.c.l.b16 %v449
          %v537 = vpack.c.b16 %v522, %v521
          %v538 = vpack.c.b16 %v524, %v523
          %v539 = vpack.c.b16 %v526, %v525
          %v540 = vpack.c.b16 %v528, %v527
          %v541 = vpack.c.b16 %v530, %v529
          %v542 = vpack.c.b16 %v532, %v531
          %v543 = vpack.c.b16 %v534, %v533
          %v544 = vpack.c.b16 %v536, %v535
          %553 = vmatprep.subr.bf16.mxu0 0
          %554 = vmatpush1.bf16.msra.mxu0 %v537
          %555 = vmatprep.subr.bf16.mxu0 0
          %556 = vmatpush1.bf16.msra.mxu0 %v538
          %557 = vmatprep.subr.bf16.mxu0 0
          %558 = vmatpush1.bf16.msra.mxu0 %v539
          %559 = vmatprep.subr.bf16.mxu0 0
          %560 = vmatpush1.bf16.msra.mxu0 %v540
          %561 = vmatprep.subr.bf16.mxu0 0
          %562 = vmatpush1.bf16.msra.mxu0 %v541
          %563 = vmatprep.subr.bf16.mxu0 0
          %564 = vmatpush1.bf16.msra.mxu0 %v542
          %565 = vmatprep.subr.bf16.mxu0 0
          %566 = vmatpush1.bf16.msra.mxu0 %v543
          %567 = vmatprep.subr.bf16.mxu0 0
          %568 = vmatpush1.bf16.msra.mxu0 %v544
          %569 = vmatprep.subr.bf16.mxu0 0
          %570 = vmatpush1.bf16.msra.mxu0 0
          %571 = vmatprep.subr.bf16.mxu0 0
          %572 = vmatpush1.bf16.msra.mxu0 0
          %573 = vmatprep.subr.bf16.mxu0 0
          %574 = vmatpush1.bf16.msra.mxu0 0
          %575 = vmatprep.subr.bf16.mxu0 0
          %576 = vmatpush1.bf16.msra.mxu0 0
          %577 = vmatprep.subr.bf16.mxu0 0
          %578 = vmatpush1.bf16.msra.mxu0 0
          %579 = vmatprep.subr.bf16.mxu0 0
          %580 = vmatpush1.bf16.msra.mxu0 0
          %581 = vmatprep.subr.bf16.mxu0 0
          %582 = vmatpush1.bf16.msra.mxu0 0
          %583 = vmatprep.subr.bf16.mxu0 0
          %584 = vmatpush1.bf16.msra.mxu0 0
          %585 = vmatprep.mubr.bf16.mxu0 0
          %586 = vmatmul.mubr.bf16.gmra.mrb[0].mxu0 %v489
          %v587 = vpop.f32.mrb[0].mxu0
          %v588 = vadd.f32 %v455, %v587
          %v589 = vpop.f32.mrb[0].mxu0
          %v590 = vpop.f32.mrb[0].mxu0
          %v591 = vadd.f32 %v455, %v590
          %v592 = vpop.f32.mrb[0].mxu0
          %593 = vmatprep.mubr.bf16.mxu0 0
          %594 = vmatmul.mubr.bf16.gmra.mrb[0].mxu0 %v490
          %v595 = vpop.f32.mrb[0].mxu0
          %v596 = vadd.f32 %v455, %v595
          %v597 = vpop.f32.mrb[0].mxu0
          %v598 = vpop.f32.mrb[0].mxu0
          %v599 = vadd.f32 %v455, %v598
          %v600 = vpop.f32.mrb[0].mxu0
          %601 = vmatprep.mubr.bf16.mxu0 0
          %602 = vmatmul.mubr.bf16.gmra.mrb[0].mxu0 %v491
          %v603 = vpop.f32.mrb[0].mxu0
          %v604 = vadd.f32 %v455, %v603
          %v605 = vpop.f32.mrb[0].mxu0
          %v606 = vpop.f32.mrb[0].mxu0
          %v607 = vadd.f32 %v455, %v606
          %v608 = vpop.f32.mrb[0].mxu0
          %609 = vmatprep.mubr.bf16.mxu0 0
          %610 = vmatmul.mubr.bf16.gmra.mrb[0].mxu0 %v492
          %v611 = vpop.f32.mrb[0].mxu0
          %v612 = vadd.f32 %v455, %v611
          %v613 = vpop.f32.mrb[0].mxu0
          %v614 = vpop.f32.mrb[0].mxu0
          %v615 = vadd.f32 %v455, %v614
          %v616 = vpop.f32.mrb[0].mxu0
          %617 = vmatprep.mubr.bf16.mxu0 0
          %618 = vmatmul.mubr.bf16.gmra.mrb[0].mxu0 %v493
          %v619 = vpop.f32.mrb[0].mxu0
          %v620 = vadd.f32 %v455, %v619
          %v621 = vpop.f32.mrb[0].mxu0
          %v622 = vpop.f32.mrb[0].mxu0
          %v623 = vadd.f32 %v455, %v622
          %v624 = vpop.f32.mrb[0].mxu0
          %625 = vmatprep.mubr.bf16.mxu0 0
          %626 = vmatmul.mubr.bf16.gmra.mrb[0].mxu0 %v494
          %v627 = vpop.f32.mrb[0].mxu0
          %v628 = vadd.f32 %v455, %v627
          %v629 = vpop.f32.mrb[0].mxu0
          %v630 = vpop.f32.mrb[0].mxu0
          %v631 = vadd.f32 %v455, %v630
          %v632 = vpop.f32.mrb[0].mxu0
          %633 = vmatprep.mubr.bf16.mxu0 0
          %634 = vmatmul.mubr.bf16.gmra.mrb[0].mxu0 %v495
          %v635 = vpop.f32.mrb[0].mxu0
          %v636 = vadd.f32 %v455, %v635
          %v637 = vpop.f32.mrb[0].mxu0
          %v638 = vpop.f32.mrb[0].mxu0
          %v639 = vadd.f32 %v455, %v638
          %v640 = vpop.f32.mrb[0].mxu0
          %641 = vmatprep.mubr.bf16.mxu0 0
          %642 = vmatmul.mubr.bf16.gmra.mrb[0].mxu0 %v496
          %v643 = vpop.f32.mrb[0].mxu0
          %v644 = vadd.f32 %v455, %v643
          %v645 = vpop.f32.mrb[0].mxu0
          %v646 = vpop.f32.mrb[0].mxu0
          %v647 = vadd.f32 %v455, %v646
          %v648 = vpop.f32.mrb[0].mxu0
          %649 = vdwg.mxu0
          %v650 = vmax.f32 %v588, 0.0
          %v651 = vmax.f32 %v591, 0.0
          %v652 = vmax.f32 %v596, 0.0
          %v653 = vmax.f32 %v599, 0.0
          %v654 = vmax.f32 %v604, 0.0
          %v655 = vmax.f32 %v607, 0.0
          %v656 = vmax.f32 %v612, 0.0
          %v657 = vmax.f32 %v615, 0.0
          %v658 = vmax.f32 %v620, 0.0
          %v659 = vmax.f32 %v623, 0.0
          %v660 = vmax.f32 %v628, 0.0
          %v661 = vmax.f32 %v631, 0.0
          %v662 = vmax.f32 %v636, 0.0
          %v663 = vmax.f32 %v639, 0.0
          %v664 = vmax.f32 %v644, 0.0
          %v665 = vmax.f32 %v647, 0.0
          %v666 = vpack.c.bf16 %v651, %v650
          %v667 = vpack.c.bf16 %v653, %v652
          %v668 = vpack.c.bf16 %v655, %v654
          %v669 = vpack.c.bf16 %v657, %v656
          %v670 = vpack.c.bf16 %v659, %v658
          %v671 = vpack.c.bf16 %v661, %v660
          %v672 = vpack.c.bf16 %v663, %v662
          %v673 = vpack.c.bf16 %v665, %v664
          %674 = vst [vmem:[#allocation2] sm:$0xff] %v666
          %675 = vst [vmem:[#allocation2 + $0x8] sm:$0xff] %v667
          %676 = vst [vmem:[#allocation2 + $0x10] sm:$0xff] %v668
          %677 = vst [vmem:[#allocation2 + $0x18] sm:$0xff] %v669
          %678 = vst [vmem:[#allocation2 + $0x20] sm:$0xff] %v670
          %679 = vst [vmem:[#allocation2 + $0x28] sm:$0xff] %v671
          %680 = vst [vmem:[#allocation2 + $0x30] sm:$0xff] %v672
          %681 = vst [vmem:[#allocation2 + $0x38] sm:$0xff] %v673
          %682 = vst [vmem:[#allocation3] sm:$0xff] %v666
          %683 = vst [vmem:[#allocation3 + $0x8] sm:$0xff] %v667
          %684 = vst [vmem:[#allocation3 + $0x10] sm:$0xff] %v668
          %685 = vst [vmem:[#allocation3 + $0x18] sm:$0xff] %v669
          %686 = vst [vmem:[#allocation3 + $0x20] sm:$0xff] %v670
          %687 = vst [vmem:[#allocation3 + $0x28] sm:$0xff] %v671
          %688 = vst [vmem:[#allocation3 + $0x30] sm:$0xff] %v672
          %689 = vst [vmem:[#allocation3 + $0x38] sm:$0xff] %v673
        $region80: #{tpu_custom_call.1} parent=51 // pred_fallthru
          _
        %s690 = sld [smem:[#allocation5 + %s31]]
        %s691 = ssub.f32 1.0, %s690
        %s692 = smul.f32 %s691, 0.9
        %s693 = smul.f32 %s691, 0.1
        %v694 = vld [vmem:[#allocation2] sm:$0xff]
        %v695 = vld [vmem:[#allocation2 + $0x8] sm:$0xff]
        %v696 = vld [vmem:[#allocation2 + $0x10] sm:$0xff]
        %v697 = vld [vmem:[#allocation2 + $0x18] sm:$0xff]
        %v698 = vld [vmem:[#allocation2 + $0x20] sm:$0xff]
        %v699 = vld [vmem:[#allocation2 + $0x28] sm:$0xff]
        %v700 = vld [vmem:[#allocation2 + $0x30] sm:$0xff]
        %v701 = vld [vmem:[#allocation2 + $0x38] sm:$0xff]
        %v702 = vld [vmem:[#allocation3] sm:$0xff]
        %v703 = vld [vmem:[#allocation3 + $0x8] sm:$0xff]
        %v704 = vld [vmem:[#allocation3 + $0x10] sm:$0xff]
        %v705 = vld [vmem:[#allocation3 + $0x18] sm:$0xff]
        %v706 = vld [vmem:[#allocation3 + $0x20] sm:$0xff]
        %v707 = vld [vmem:[#allocation3 + $0x28] sm:$0xff]
        %v708 = vld [vmem:[#allocation3 + $0x30] sm:$0xff]
        %v709 = vld [vmem:[#allocation3 + $0x38] sm:$0xff]
        %v710 = vld [vmem:[#allocation6] sm:$0xf]
        %v711 = vld [vmem:[#allocation6 + $0x4] sm:$0xf]
        %v712 = vld [vmem:[#allocation6 + $0x8] sm:$0xf]
        %v713 = vld [vmem:[#allocation6 + $0xc] sm:$0xf]
        %v714 = vld [vmem:[#allocation6 + $0x10] sm:$0xf]
        %v715 = vld [vmem:[#allocation6 + $0x14] sm:$0xf]
        %v716 = vld [vmem:[#allocation6 + $0x18] sm:$0xf]
        %v717 = vld [vmem:[#allocation6 + $0x1c] sm:$0xf]
        %v718 = vld [vmem:[#allocation6 + $0x20] sm:$0xf]
        %v719 = vld [vmem:[#allocation6 + $0x24] sm:$0xf]
        %v720 = vld [vmem:[#allocation6 + $0x28] sm:$0xf]
        %v721 = vld [vmem:[#allocation6 + $0x2c] sm:$0xf]
        %v722 = vld [vmem:[#allocation6 + $0x30] sm:$0xf]
        %v723 = vld [vmem:[#allocation6 + $0x34] sm:$0xf]
        %v724 = vld [vmem:[#allocation6 + $0x38] sm:$0xf]
        %v725 = vld [vmem:[#allocation6 + $0x3c] sm:$0xf]
        %v742 = vunpack.c.l.b16 %v710
        %v743 = vunpack.c.l.b16 %v711
        %v744 = vunpack.c.l.b16 %v712
        %v745 = vunpack.c.l.b16 %v713
        %v746 = vunpack.c.l.b16 %v714
        %v747 = vunpack.c.l.b16 %v715
        %v748 = vunpack.c.l.b16 %v716
        %v749 = vunpack.c.l.b16 %v717
        %v750 = vunpack.c.l.b16 %v718
        %v751 = vunpack.c.l.b16 %v719
        %v752 = vunpack.c.l.b16 %v720
        %v753 = vunpack.c.l.b16 %v721
        %v754 = vunpack.c.l.b16 %v722
        %v755 = vunpack.c.l.b16 %v723
        %v756 = vunpack.c.l.b16 %v724
        %v757 = vunpack.c.l.b16 %v725
        %v758 = vpack.c.b16 %v743, %v742
        %v759 = vpack.c.b16 %v745, %v744
        %v760 = vpack.c.b16 %v747, %v746
        %v761 = vpack.c.b16 %v749, %v748
        %v762 = vpack.c.b16 %v751, %v750
        %v763 = vpack.c.b16 %v753, %v752
        %v764 = vpack.c.b16 %v755, %v754
        %v765 = vpack.c.b16 %v757, %v756
        %774 = vmatprep.subr.bf16.mxu0 0
        %775 = vmatpush1.bf16.msra.mxu0 %v694
        %776 = vmatprep.subr.bf16.mxu0 0
        %777 = vmatpush1.bf16.msra.mxu0 %v695
        %778 = vmatprep.subr.bf16.mxu0 0
        %779 = vmatpush1.bf16.msra.mxu0 %v696
        %780 = vmatprep.subr.bf16.mxu0 0
        %781 = vmatpush1.bf16.msra.mxu0 %v697
        %782 = vmatprep.subr.bf16.mxu0 0
        %783 = vmatpush1.bf16.msra.mxu0 %v698
        %784 = vmatprep.subr.bf16.mxu0 0
        %785 = vmatpush1.bf16.msra.mxu0 %v699
        %786 = vmatprep.subr.bf16.mxu0 0
        %787 = vmatpush1.bf16.msra.mxu0 %v700
        %788 = vmatprep.subr.bf16.mxu0 0
        %789 = vmatpush1.bf16.msra.mxu0 %v701
        %790 = vmatprep.subr.bf16.mxu0 0
        %791 = vmatpush1.bf16.msra.mxu0 0
        %792 = vmatprep.subr.bf16.mxu0 0
        %793 = vmatpush1.bf16.msra.mxu0 0
        %794 = vmatprep.subr.bf16.mxu0 0
        %795 = vmatpush1.bf16.msra.mxu0 0
        %796 = vmatprep.subr.bf16.mxu0 0
        %797 = vmatpush1.bf16.msra.mxu0 0
        %798 = vmatprep.subr.bf16.mxu0 0
        %799 = vmatpush1.bf16.msra.mxu0 0
        %800 = vmatprep.subr.bf16.mxu0 0
        %801 = vmatpush1.bf16.msra.mxu0 0
        %802 = vmatprep.subr.bf16.mxu0 0
        %803 = vmatpush1.bf16.msra.mxu0 0
        %804 = vmatprep.subr.bf16.mxu0 0
        %805 = vmatpush1.bf16.msra.mxu0 0
        %806 = vmatprep.mubr.bf16.mxu0 0
        %807 = vmatmul.mubr.bf16.gmra.mrb[0].mxu0 %v758
        %v808 = vpop.f32.mrb[0].mxu0
        %v809 = vadd.f32 0.0, %v808
        %v810 = vpop.f32.mrb[0].mxu0
        %v811 = vpop.f32.mrb[0].mxu0
        %v812 = vadd.f32 0.0, %v811
        %v813 = vpop.f32.mrb[0].mxu0
        %814 = vmatprep.mubr.bf16.mxu0 0
        %815 = vmatmul.mubr.bf16.gmra.mrb[0].mxu0 %v759
        %v816 = vpop.f32.mrb[0].mxu0
        %v817 = vadd.f32 0.0, %v816
        %v818 = vpop.f32.mrb[0].mxu0
        %v819 = vpop.f32.mrb[0].mxu0
        %v820 = vadd.f32 0.0, %v819
        %v821 = vpop.f32.mrb[0].mxu0
        %822 = vmatprep.mubr.bf16.mxu0 0
        %823 = vmatmul.mubr.bf16.gmra.mrb[0].mxu0 %v760
        %v824 = vpop.f32.mrb[0].mxu0
        %v825 = vadd.f32 0.0, %v824
        %v826 = vpop.f32.mrb[0].mxu0
        %v827 = vpop.f32.mrb[0].mxu0
        %v828 = vadd.f32 0.0, %v827
        %v829 = vpop.f32.mrb[0].mxu0
        %830 = vmatprep.mubr.bf16.mxu0 0
        %831 = vmatmul.mubr.bf16.gmra.mrb[0].mxu0 %v761
        %v832 = vpop.f32.mrb[0].mxu0
        %v833 = vadd.f32 0.0, %v832
        %v834 = vpop.f32.mrb[0].mxu0
        %v835 = vpop.f32.mrb[0].mxu0
        %v836 = vadd.f32 0.0, %v835
        %v837 = vpop.f32.mrb[0].mxu0
        %838 = vmatprep.mubr.bf16.mxu0 0
        %839 = vmatmul.mubr.bf16.gmra.mrb[0].mxu0 %v762
        %v840 = vpop.f32.mrb[0].mxu0
        %v841 = vadd.f32 0.0, %v840
        %v842 = vpop.f32.mrb[0].mxu0
        %v843 = vpop.f32.mrb[0].mxu0
        %v844 = vadd.f32 0.0, %v843
        %v845 = vpop.f32.mrb[0].mxu0
        %846 = vmatprep.mubr.bf16.mxu0 0
        %847 = vmatmul.mubr.bf16.gmra.mrb[0].mxu0 %v763
        %v848 = vpop.f32.mrb[0].mxu0
        %v849 = vadd.f32 0.0, %v848
        %v850 = vpop.f32.mrb[0].mxu0
        %v851 = vpop.f32.mrb[0].mxu0
        %v852 = vadd.f32 0.0, %v851
        %v853 = vpop.f32.mrb[0].mxu0
        %854 = vmatprep.mubr.bf16.mxu0 0
        %855 = vmatmul.mubr.bf16.gmra.mrb[0].mxu0 %v764
        %v856 = vpop.f32.mrb[0].mxu0
        %v857 = vadd.f32 0.0, %v856
        %v858 = vpop.f32.mrb[0].mxu0
        %v859 = vpop.f32.mrb[0].mxu0
        %v860 = vadd.f32 0.0, %v859
        %v861 = vpop.f32.mrb[0].mxu0
        %862 = vmatprep.mubr.bf16.mxu0 0
        %863 = vmatmul.mubr.bf16.gmra.mrb[0].mxu0 %v765
        %v864 = vpop.f32.mrb[0].mxu0
        %v865 = vadd.f32 0.0, %v864
        %v866 = vpop.f32.mrb[0].mxu0
        %v867 = vpop.f32.mrb[0].mxu0
        %v868 = vadd.f32 0.0, %v867
        %v869 = vpop.f32.mrb[0].mxu0
        %870 = vdwg.mxu0
        %v871 = vstv %s692
        %v872 = vmul.f32 %v871, %v809
        %v873 = vmul.f32 %v871, %v812
        %v874 = vmul.f32 %v871, %v817
        %v875 = vmul.f32 %v871, %v820
        %v876 = vmul.f32 %v871, %v825
        %v877 = vmul.f32 %v871, %v828
        %v878 = vmul.f32 %v871, %v833
        %v879 = vmul.f32 %v871, %v836
        %v880 = vmul.f32 %v871, %v841
        %v881 = vmul.f32 %v871, %v844
        %v882 = vmul.f32 %v871, %v849
        %v883 = vmul.f32 %v871, %v852
        %v884 = vmul.f32 %v871, %v857
        %v885 = vmul.f32 %v871, %v860
        %v886 = vmul.f32 %v871, %v865
        %v887 = vmul.f32 %v871, %v868
        %v888 = vpack.c.bf16 %v812, %v809
        %v889 = vpack.c.bf16 %v820, %v817
        %v890 = vpack.c.bf16 %v828, %v825
        %v891 = vpack.c.bf16 %v836, %v833
        %v892 = vpack.c.bf16 %v844, %v841
        %v893 = vpack.c.bf16 %v852, %v849
        %v894 = vpack.c.bf16 %v860, %v857
        %v895 = vpack.c.bf16 %v868, %v865
        %v896 = vld [vmem:[%s367] sm:$0xf]
        %v897 = vld [vmem:[%s367 + $0x4] sm:$0xf]
        %v898 = vld [vmem:[%s367 + $0x8] sm:$0xf]
        %v899 = vld [vmem:[%s367 + $0xc] sm:$0xf]
        %v900 = vld [vmem:[%s367 + $0x10] sm:$0xf]
        %v901 = vld [vmem:[%s367 + $0x14] sm:$0xf]
        %v902 = vld [vmem:[%s367 + $0x18] sm:$0xf]
        %v903 = vld [vmem:[%s367 + $0x1c] sm:$0xf]
        %v904 = vld [vmem:[%s367 + $0x20] sm:$0xf]
        %v905 = vld [vmem:[%s367 + $0x24] sm:$0xf]
        %v906 = vld [vmem:[%s367 + $0x28] sm:$0xf]
        %v907 = vld [vmem:[%s367 + $0x2c] sm:$0xf]
        %v908 = vld [vmem:[%s367 + $0x30] sm:$0xf]
        %v909 = vld [vmem:[%s367 + $0x34] sm:$0xf]
        %v910 = vld [vmem:[%s367 + $0x38] sm:$0xf]
        %v911 = vld [vmem:[%s367 + $0x3c] sm:$0xf]
        %v928 = vunpack.c.l.b16 %v896
        %v929 = vunpack.c.l.b16 %v897
        %v930 = vunpack.c.l.b16 %v898
        %v931 = vunpack.c.l.b16 %v899
        %v932 = vunpack.c.l.b16 %v900
        %v933 = vunpack.c.l.b16 %v901
        %v934 = vunpack.c.l.b16 %v902
        %v935 = vunpack.c.l.b16 %v903
        %v936 = vunpack.c.l.b16 %v904
        %v937 = vunpack.c.l.b16 %v905
        %v938 = vunpack.c.l.b16 %v906
        %v939 = vunpack.c.l.b16 %v907
        %v940 = vunpack.c.l.b16 %v908
        %v941 = vunpack.c.l.b16 %v909
        %v942 = vunpack.c.l.b16 %v910
        %v943 = vunpack.c.l.b16 %v911
        %v944 = vpack.c.b16 %v929, %v928
        %v945 = vpack.c.b16 %v931, %v930
        %v946 = vpack.c.b16 %v933, %v932
        %v947 = vpack.c.b16 %v935, %v934
        %v948 = vpack.c.b16 %v937, %v936
        %v949 = vpack.c.b16 %v939, %v938
        %v950 = vpack.c.b16 %v941, %v940
        %v951 = vpack.c.b16 %v943, %v942
        %960 = vmatprep.subr.bf16.mxu0 0
        %961 = vmatpush1.bf16.msra.mxu0 %v944
        %962 = vmatprep.subr.bf16.mxu0 0
        %963 = vmatpush1.bf16.msra.mxu0 %v945
        %964 = vmatprep.subr.bf16.mxu0 0
        %965 = vmatpush1.bf16.msra.mxu0 %v946
        %966 = vmatprep.subr.bf16.mxu0 0
        %967 = vmatpush1.bf16.msra.mxu0 %v947
        %968 = vmatprep.subr.bf16.mxu0 0
        %969 = vmatpush1.bf16.msra.mxu0 %v948
        %970 = vmatprep.subr.bf16.mxu0 0
        %971 = vmatpush1.bf16.msra.mxu0 %v949
        %972 = vmatprep.subr.bf16.mxu0 0
        %973 = vmatpush1.bf16.msra.mxu0 %v950
        %974 = vmatprep.subr.bf16.mxu0 0
        %975 = vmatpush1.bf16.msra.mxu0 %v951
        %976 = vmatprep.subr.bf16.mxu0 0
        %977 = vmatpush1.bf16.msra.mxu0 0
        %978 = vmatprep.subr.bf16.mxu0 0
        %979 = vmatpush1.bf16.msra.mxu0 0
        %980 = vmatprep.subr.bf16.mxu0 0
        %981 = vmatpush1.bf16.msra.mxu0 0
        %982 = vmatprep.subr.bf16.mxu0 0
        %983 = vmatpush1.bf16.msra.mxu0 0
        %984 = vmatprep.subr.bf16.mxu0 0
        %985 = vmatpush1.bf16.msra.mxu0 0
        %986 = vmatprep.subr.bf16.mxu0 0
        %987 = vmatpush1.bf16.msra.mxu0 0
        %988 = vmatprep.subr.bf16.mxu0 0
        %989 = vmatpush1.bf16.msra.mxu0 0
        %990 = vmatprep.subr.bf16.mxu0 0
        %991 = vmatpush1.bf16.msra.mxu0 0
        %992 = vmatprep.mubr.bf16.mxu0 0
        %993 = vmatmul.mubr.bf16.gmra.mrb[0].mxu0 %v888
        %v994 = vpop.f32.mrb[0].mxu0
        %v995 = vadd.f32 0.0, %v994
        %v996 = vpop.f32.mrb[0].mxu0
        %v997 = vpop.f32.mrb[0].mxu0
        %v998 = vadd.f32 0.0, %v997
        %v999 = vpop.f32.mrb[0].mxu0
        %1000 = vmatprep.mubr.bf16.mxu0 0
        %1001 = vmatmul.mubr.bf16.gmra.mrb[0].mxu0 %v889
        %v1002 = vpop.f32.mrb[0].mxu0
        %v1003 = vadd.f32 0.0, %v1002
        %v1004 = vpop.f32.mrb[0].mxu0
        %v1005 = vpop.f32.mrb[0].mxu0
        %v1006 = vadd.f32 0.0, %v1005
        %v1007 = vpop.f32.mrb[0].mxu0
        %1008 = vmatprep.mubr.bf16.mxu0 0
        %1009 = vmatmul.mubr.bf16.gmra.mrb[0].mxu0 %v890
        %v1010 = vpop.f32.mrb[0].mxu0
        %v1011 = vadd.f32 0.0, %v1010
        %v1012 = vpop.f32.mrb[0].mxu0
        %v1013 = vpop.f32.mrb[0].mxu0
        %v1014 = vadd.f32 0.0, %v1013
        %v1015 = vpop.f32.mrb[0].mxu0
        %1016 = vmatprep.mubr.bf16.mxu0 0
        %1017 = vmatmul.mubr.bf16.gmra.mrb[0].mxu0 %v891
        %v1018 = vpop.f32.mrb[0].mxu0
        %v1019 = vadd.f32 0.0, %v1018
        %v1020 = vpop.f32.mrb[0].mxu0
        %v1021 = vpop.f32.mrb[0].mxu0
        %v1022 = vadd.f32 0.0, %v1021
        %v1023 = vpop.f32.mrb[0].mxu0
        %1024 = vmatprep.mubr.bf16.mxu0 0
        %1025 = vmatmul.mubr.bf16.gmra.mrb[0].mxu0 %v892
        %v1026 = vpop.f32.mrb[0].mxu0
        %v1027 = vadd.f32 0.0, %v1026
        %v1028 = vpop.f32.mrb[0].mxu0
        %v1029 = vpop.f32.mrb[0].mxu0
        %v1030 = vadd.f32 0.0, %v1029
        %v1031 = vpop.f32.mrb[0].mxu0
        %1032 = vmatprep.mubr.bf16.mxu0 0
        %1033 = vmatmul.mubr.bf16.gmra.mrb[0].mxu0 %v893
        %v1034 = vpop.f32.mrb[0].mxu0
        %v1035 = vadd.f32 0.0, %v1034
        %v1036 = vpop.f32.mrb[0].mxu0
        %v1037 = vpop.f32.mrb[0].mxu0
        %v1038 = vadd.f32 0.0, %v1037
        %v1039 = vpop.f32.mrb[0].mxu0
        %1040 = vmatprep.mubr.bf16.mxu0 0
        %1041 = vmatmul.mubr.bf16.gmra.mrb[0].mxu0 %v894
        %v1042 = vpop.f32.mrb[0].mxu0
        %v1043 = vadd.f32 0.0, %v1042
        %v1044 = vpop.f32.mrb[0].mxu0
        %v1045 = vpop.f32.mrb[0].mxu0
        %v1046 = vadd.f32 0.0, %v1045
        %v1047 = vpop.f32.mrb[0].mxu0
        %1048 = vmatprep.mubr.bf16.mxu0 0
        %1049 = vmatmul.mubr.bf16.gmra.mrb[0].mxu0 %v895
        %v1050 = vpop.f32.mrb[0].mxu0
        %v1051 = vadd.f32 0.0, %v1050
        %v1052 = vpop.f32.mrb[0].mxu0
        %v1053 = vpop.f32.mrb[0].mxu0
        %v1054 = vadd.f32 0.0, %v1053
        %v1055 = vpop.f32.mrb[0].mxu0
        %1056 = vdwg.mxu0
        %v1057 = vstv %s690
        %v1058 = vmul.f32 %v1057, %v995
        %v1059 = vmul.f32 %v1057, %v998
        %v1060 = vmul.f32 %v1057, %v1003
        %v1061 = vmul.f32 %v1057, %v1006
        %v1062 = vmul.f32 %v1057, %v1011
        %v1063 = vmul.f32 %v1057, %v1014
        %v1064 = vmul.f32 %v1057, %v1019
        %v1065 = vmul.f32 %v1057, %v1022
        %v1066 = vmul.f32 %v1057, %v1027
        %v1067 = vmul.f32 %v1057, %v1030
        %v1068 = vmul.f32 %v1057, %v1035
        %v1069 = vmul.f32 %v1057, %v1038
        %v1070 = vmul.f32 %v1057, %v1043
        %v1071 = vmul.f32 %v1057, %v1046
        %v1072 = vmul.f32 %v1057, %v1051
        %v1073 = vmul.f32 %v1057, %v1054
        %v1074 = vadd.f32 %v872, %v1058
        %v1075 = vadd.f32 %v873, %v1059
        %v1076 = vadd.f32 %v874, %v1060
        %v1077 = vadd.f32 %v875, %v1061
        %v1078 = vadd.f32 %v876, %v1062
        %v1079 = vadd.f32 %v877, %v1063
        %v1080 = vadd.f32 %v878, %v1064
        %v1081 = vadd.f32 %v879, %v1065
        %v1082 = vadd.f32 %v880, %v1066
        %v1083 = vadd.f32 %v881, %v1067
        %v1084 = vadd.f32 %v882, %v1068
        %v1085 = vadd.f32 %v883, %v1069
        %v1086 = vadd.f32 %v884, %v1070
        %v1087 = vadd.f32 %v885, %v1071
        %v1088 = vadd.f32 %v886, %v1072
        %v1089 = vadd.f32 %v887, %v1073
        %v1090 = vunpack.c.l.bf16 %v702
        %v1091 = vunpack.c.h.bf16 %v702
        %v1092 = vunpack.c.l.bf16 %v703
        %v1093 = vunpack.c.h.bf16 %v703
        %v1094 = vunpack.c.l.bf16 %v704
        %v1095 = vunpack.c.h.bf16 %v704
        %v1096 = vunpack.c.l.bf16 %v705
        %v1097 = vunpack.c.h.bf16 %v705
        %v1098 = vunpack.c.l.bf16 %v706
        %v1099 = vunpack.c.h.bf16 %v706
        %v1100 = vunpack.c.l.bf16 %v707
        %v1101 = vunpack.c.h.bf16 %v707
        %v1102 = vunpack.c.l.bf16 %v708
        %v1103 = vunpack.c.h.bf16 %v708
        %v1104 = vunpack.c.l.bf16 %v709
        %v1105 = vunpack.c.h.bf16 %v709
        %v1106 = vstv %s693
        %v1107 = vmul.f32 %v1106, %v1090
        %v1108 = vmul.f32 %v1106, %v1091
        %v1109 = vmul.f32 %v1106, %v1092
        %v1110 = vmul.f32 %v1106, %v1093
        %v1111 = vmul.f32 %v1106, %v1094
        %v1112 = vmul.f32 %v1106, %v1095
        %v1113 = vmul.f32 %v1106, %v1096
        %v1114 = vmul.f32 %v1106, %v1097
        %v1115 = vmul.f32 %v1106, %v1098
        %v1116 = vmul.f32 %v1106, %v1099
        %v1117 = vmul.f32 %v1106, %v1100
        %v1118 = vmul.f32 %v1106, %v1101
        %v1119 = vmul.f32 %v1106, %v1102
        %v1120 = vmul.f32 %v1106, %v1103
        %v1121 = vmul.f32 %v1106, %v1104
        %v1122 = vmul.f32 %v1106, %v1105
        %v1123 = vld [vmem:[%s376] sm:$0xf]
        %v1124 = vld [vmem:[%s376 + $0x4] sm:$0xf]
        %v1125 = vld [vmem:[%s376 + $0x8] sm:$0xf]
        %v1126 = vld [vmem:[%s376 + $0xc] sm:$0xf]
        %v1127 = vld [vmem:[%s376 + $0x10] sm:$0xf]
        %v1128 = vld [vmem:[%s376 + $0x14] sm:$0xf]
        %v1129 = vld [vmem:[%s376 + $0x18] sm:$0xf]
        %v1130 = vld [vmem:[%s376 + $0x1c] sm:$0xf]
        %v1131 = vld [vmem:[%s376 + $0x20] sm:$0xf]
        %v1132 = vld [vmem:[%s376 + $0x24] sm:$0xf]
        %v1133 = vld [vmem:[%s376 + $0x28] sm:$0xf]
        %v1134 = vld [vmem:[%s376 + $0x2c] sm:$0xf]
        %v1135 = vld [vmem:[%s376 + $0x30] sm:$0xf]
        %v1136 = vld [vmem:[%s376 + $0x34] sm:$0xf]
        %v1137 = vld [vmem:[%s376 + $0x38] sm:$0xf]
        %v1138 = vld [vmem:[%s376 + $0x3c] sm:$0xf]
        %v1155 = vunpack.c.l.b16 %v1123
        %v1156 = vunpack.c.l.b16 %v1124
        %v1157 = vunpack.c.l.b16 %v1125
        %v1158 = vunpack.c.l.b16 %v1126
        %v1159 = vunpack.c.l.b16 %v1127
        %v1160 = vunpack.c.l.b16 %v1128
        %v1161 = vunpack.c.l.b16 %v1129
        %v1162 = vunpack.c.l.b16 %v1130
        %v1163 = vunpack.c.l.b16 %v1131
        %v1164 = vunpack.c.l.b16 %v1132
        %v1165 = vunpack.c.l.b16 %v1133
        %v1166 = vunpack.c.l.b16 %v1134
        %v1167 = vunpack.c.l.b16 %v1135
        %v1168 = vunpack.c.l.b16 %v1136
        %v1169 = vunpack.c.l.b16 %v1137
        %v1170 = vunpack.c.l.b16 %v1138
        %v1171 = vpack.c.b16 %v1156, %v1155
        %v1172 = vpack.c.b16 %v1158, %v1157
        %v1173 = vpack.c.b16 %v1160, %v1159
        %v1174 = vpack.c.b16 %v1162, %v1161
        %v1175 = vpack.c.b16 %v1164, %v1163
        %v1176 = vpack.c.b16 %v1166, %v1165
        %v1177 = vpack.c.b16 %v1168, %v1167
        %v1178 = vpack.c.b16 %v1170, %v1169
        %1187 = vmatprep.subr.bf16.mxu0 0
        %1188 = vmatpush1.bf16.msra.mxu0 %v1171
        %1189 = vmatprep.subr.bf16.mxu0 0
        %1190 = vmatpush1.bf16.msra.mxu0 %v1172
        %1191 = vmatprep.subr.bf16.mxu0 0
        %1192 = vmatpush1.bf16.msra.mxu0 %v1173
        %1193 = vmatprep.subr.bf16.mxu0 0
        %1194 = vmatpush1.bf16.msra.mxu0 %v1174
        %1195 = vmatprep.subr.bf16.mxu0 0
        %1196 = vmatpush1.bf16.msra.mxu0 %v1175
        %1197 = vmatprep.subr.bf16.mxu0 0
        %1198 = vmatpush1.bf16.msra.mxu0 %v1176
        %1199 = vmatprep.subr.bf16.mxu0 0
        %1200 = vmatpush1.bf16.msra.mxu0 %v1177
        %1201 = vmatprep.subr.bf16.mxu0 0
        %1202 = vmatpush1.bf16.msra.mxu0 %v1178
        %1203 = vmatprep.subr.bf16.mxu0 0
        %1204 = vmatpush1.bf16.msra.mxu0 0
        %1205 = vmatprep.subr.bf16.mxu0 0
        %1206 = vmatpush1.bf16.msra.mxu0 0
        %1207 = vmatprep.subr.bf16.mxu0 0
        %1208 = vmatpush1.bf16.msra.mxu0 0
        %1209 = vmatprep.subr.bf16.mxu0 0
        %1210 = vmatpush1.bf16.msra.mxu0 0
        %1211 = vmatprep.subr.bf16.mxu0 0
        %1212 = vmatpush1.bf16.msra.mxu0 0
        %1213 = vmatprep.subr.bf16.mxu0 0
        %1214 = vmatpush1.bf16.msra.mxu0 0
        %1215 = vmatprep.subr.bf16.mxu0 0
        %1216 = vmatpush1.bf16.msra.mxu0 0
        %1217 = vmatprep.subr.bf16.mxu0 0
        %1218 = vmatpush1.bf16.msra.mxu0 0
        %1219 = vmatprep.mubr.bf16.mxu0 0
        %1220 = vmatmul.mubr.bf16.gmra.mrb[0].mxu0 %v702
        %v1221 = vpop.f32.mrb[0].mxu0
        %v1222 = vadd.f32 0.0, %v1221
        %v1223 = vpop.f32.mrb[0].mxu0
        %v1224 = vpop.f32.mrb[0].mxu0
        %v1225 = vadd.f32 0.0, %v1224
        %v1226 = vpop.f32.mrb[0].mxu0
        %1227 = vmatprep.mubr.bf16.mxu0 0
        %1228 = vmatmul.mubr.bf16.gmra.mrb[0].mxu0 %v703
        %v1229 = vpop.f32.mrb[0].mxu0
        %v1230 = vadd.f32 0.0, %v1229
        %v1231 = vpop.f32.mrb[0].mxu0
        %v1232 = vpop.f32.mrb[0].mxu0
        %v1233 = vadd.f32 0.0, %v1232
        %v1234 = vpop.f32.mrb[0].mxu0
        %1235 = vmatprep.mubr.bf16.mxu0 0
        %1236 = vmatmul.mubr.bf16.gmra.mrb[0].mxu0 %v704
        %v1237 = vpop.f32.mrb[0].mxu0
        %v1238 = vadd.f32 0.0, %v1237
        %v1239 = vpop.f32.mrb[0].mxu0
        %v1240 = vpop.f32.mrb[0].mxu0
        %v1241 = vadd.f32 0.0, %v1240
        %v1242 = vpop.f32.mrb[0].mxu0
        %1243 = vmatprep.mubr.bf16.mxu0 0
        %1244 = vmatmul.mubr.bf16.gmra.mrb[0].mxu0 %v705
        %v1245 = vpop.f32.mrb[0].mxu0
        %v1246 = vadd.f32 0.0, %v1245
        %v1247 = vpop.f32.mrb[0].mxu0
        %v1248 = vpop.f32.mrb[0].mxu0
        %v1249 = vadd.f32 0.0, %v1248
        %v1250 = vpop.f32.mrb[0].mxu0
        %1251 = vmatprep.mubr.bf16.mxu0 0
        %1252 = vmatmul.mubr.bf16.gmra.mrb[0].mxu0 %v706
        %v1253 = vpop.f32.mrb[0].mxu0
        %v1254 = vadd.f32 0.0, %v1253
        %v1255 = vpop.f32.mrb[0].mxu0
        %v1256 = vpop.f32.mrb[0].mxu0
        %v1257 = vadd.f32 0.0, %v1256
        %v1258 = vpop.f32.mrb[0].mxu0
        %1259 = vmatprep.mubr.bf16.mxu0 0
        %1260 = vmatmul.mubr.bf16.gmra.mrb[0].mxu0 %v707
        %v1261 = vpop.f32.mrb[0].mxu0
        %v1262 = vadd.f32 0.0, %v1261
        %v1263 = vpop.f32.mrb[0].mxu0
        %v1264 = vpop.f32.mrb[0].mxu0
        %v1265 = vadd.f32 0.0, %v1264
        %v1266 = vpop.f32.mrb[0].mxu0
        %1267 = vmatprep.mubr.bf16.mxu0 0
        %1268 = vmatmul.mubr.bf16.gmra.mrb[0].mxu0 %v708
        %v1269 = vpop.f32.mrb[0].mxu0
        %v1270 = vadd.f32 0.0, %v1269
        %v1271 = vpop.f32.mrb[0].mxu0
        %v1272 = vpop.f32.mrb[0].mxu0
        %v1273 = vadd.f32 0.0, %v1272
        %v1274 = vpop.f32.mrb[0].mxu0
        %1275 = vmatprep.mubr.bf16.mxu0 0
        %1276 = vmatmul.mubr.bf16.gmra.mrb[0].mxu0 %v709
        %v1277 = vpop.f32.mrb[0].mxu0
        %v1278 = vadd.f32 0.0, %v1277
        %v1279 = vpop.f32.mrb[0].mxu0
        %v1280 = vpop.f32.mrb[0].mxu0
        %v1281 = vadd.f32 0.0, %v1280
        %v1282 = vpop.f32.mrb[0].mxu0
        %1283 = vdwg.mxu0
        %v1284 = vmul.f32 %v1057, %v1222
        %v1285 = vmul.f32 %v1057, %v1225
        %v1286 = vmul.f32 %v1057, %v1230
        %v1287 = vmul.f32 %v1057, %v1233
        %v1288 = vmul.f32 %v1057, %v1238
        %v1289 = vmul.f32 %v1057, %v1241
        %v1290 = vmul.f32 %v1057, %v1246
        %v1291 = vmul.f32 %v1057, %v1249
        %v1292 = vmul.f32 %v1057, %v1254
        %v1293 = vmul.f32 %v1057, %v1257
        %v1294 = vmul.f32 %v1057, %v1262
        %v1295 = vmul.f32 %v1057, %v1265
        %v1296 = vmul.f32 %v1057, %v1270
        %v1297 = vmul.f32 %v1057, %v1273
        %v1298 = vmul.f32 %v1057, %v1278
        %v1299 = vmul.f32 %v1057, %v1281
        %v1300 = vadd.f32 %v1107, %v1284
        %v1301 = vadd.f32 %v1108, %v1285
        %v1302 = vadd.f32 %v1109, %v1286
        %v1303 = vadd.f32 %v1110, %v1287
        %v1304 = vadd.f32 %v1111, %v1288
        %v1305 = vadd.f32 %v1112, %v1289
        %v1306 = vadd.f32 %v1113, %v1290
        %v1307 = vadd.f32 %v1114, %v1291
        %v1308 = vadd.f32 %v1115, %v1292
        %v1309 = vadd.f32 %v1116, %v1293
        %v1310 = vadd.f32 %v1117, %v1294
        %v1311 = vadd.f32 %v1118, %v1295
        %v1312 = vadd.f32 %v1119, %v1296
        %v1313 = vadd.f32 %v1120, %v1297
        %v1314 = vadd.f32 %v1121, %v1298
        %v1315 = vadd.f32 %v1122, %v1299
        %v1316 = vadd.f32 %v1074, %v1300
        %v1317 = vadd.f32 %v1075, %v1301
        %v1318 = vadd.f32 %v1076, %v1302
        %v1319 = vadd.f32 %v1077, %v1303
        %v1320 = vadd.f32 %v1078, %v1304
        %v1321 = vadd.f32 %v1079, %v1305
        %v1322 = vadd.f32 %v1080, %v1306
        %v1323 = vadd.f32 %v1081, %v1307
        %v1324 = vadd.f32 %v1082, %v1308
        %v1325 = vadd.f32 %v1083, %v1309
        %v1326 = vadd.f32 %v1084, %v1310
        %v1327 = vadd.f32 %v1085, %v1311
        %v1328 = vadd.f32 %v1086, %v1312
        %v1329 = vadd.f32 %v1087, %v1313
        %v1330 = vadd.f32 %v1088, %v1314
        %v1331 = vadd.f32 %v1089, %v1315
        %v1332 = vmax.f32 %v1316, 0.0
        %v1333 = vmax.f32 %v1317, 0.0
        %v1334 = vmax.f32 %v1318, 0.0
        %v1335 = vmax.f32 %v1319, 0.0
        %v1336 = vmax.f32 %v1320, 0.0
        %v1337 = vmax.f32 %v1321, 0.0
        %v1338 = vmax.f32 %v1322, 0.0
        %v1339 = vmax.f32 %v1323, 0.0
        %v1340 = vmax.f32 %v1324, 0.0
        %v1341 = vmax.f32 %v1325, 0.0
        %v1342 = vmax.f32 %v1326, 0.0
        %v1343 = vmax.f32 %v1327, 0.0
        %v1344 = vmax.f32 %v1328, 0.0
        %v1345 = vmax.f32 %v1329, 0.0
        %v1346 = vmax.f32 %v1330, 0.0
        %v1347 = vmax.f32 %v1331, 0.0
        %v1348 = vpack.c.bf16 %v1333, %v1332
        %v1349 = vpack.c.bf16 %v1335, %v1334
        %v1350 = vpack.c.bf16 %v1337, %v1336
        %v1351 = vpack.c.bf16 %v1339, %v1338
        %v1352 = vpack.c.bf16 %v1341, %v1340
        %v1353 = vpack.c.bf16 %v1343, %v1342
        %v1354 = vpack.c.bf16 %v1345, %v1344
        %v1355 = vpack.c.bf16 %v1347, %v1346
        %1356 = vst [vmem:[#allocation2] sm:$0xff] %v1348
        %1357 = vst [vmem:[#allocation2 + $0x8] sm:$0xff] %v1349
        %1358 = vst [vmem:[#allocation2 + $0x10] sm:$0xff] %v1350
        %1359 = vst [vmem:[#allocation2 + $0x18] sm:$0xff] %v1351
        %1360 = vst [vmem:[#allocation2 + $0x20] sm:$0xff] %v1352
        %1361 = vst [vmem:[#allocation2 + $0x28] sm:$0xff] %v1353
        %1362 = vst [vmem:[#allocation2 + $0x30] sm:$0xff] %v1354
        %1363 = vst [vmem:[#allocation2 + $0x38] sm:$0xff] %v1355
        %p1364 = scmp.eq.s32.totalorder %s31, 3
        // Predicated region
        $region81: #{tpu_custom_call.1} parent=51 // pred_check
          %p1365 = pneg %p1364
        $region82: #{tpu_custom_call.1} parent=51 // pred_check_branch
          %1367 = sbr.rel (%p1365) target = $region84
        $region83: #{tpu_custom_call.1} parent=51 // pred_region
          %v1368 = vld [vmem:[#allocation15] sm:$0xf]
          %v1369 = vld [vmem:[#allocation15 + $0x4] sm:$0xf]
          %v1370 = vld [vmem:[#allocation15 + $0x8] sm:$0xf]
          %v1371 = vld [vmem:[#allocation15 + $0xc] sm:$0xf]
          %v1372 = vld [vmem:[#allocation15 + $0x10] sm:$0xf]
          %v1373 = vld [vmem:[#allocation15 + $0x14] sm:$0xf]
          %v1374 = vld [vmem:[#allocation15 + $0x18] sm:$0xf]
          %v1375 = vld [vmem:[#allocation15 + $0x1c] sm:$0xf]
          %v1376 = vld [vmem:[#allocation15 + $0x20] sm:$0xf]
          %v1377 = vld [vmem:[#allocation15 + $0x24] sm:$0xf]
          %v1378 = vld [vmem:[#allocation15 + $0x28] sm:$0xf]
          %v1379 = vld [vmem:[#allocation15 + $0x2c] sm:$0xf]
          %v1380 = vld [vmem:[#allocation15 + $0x30] sm:$0xf]
          %v1381 = vld [vmem:[#allocation15 + $0x34] sm:$0xf]
          %v1382 = vld [vmem:[#allocation15 + $0x38] sm:$0xf]
          %v1383 = vld [vmem:[#allocation15 + $0x3c] sm:$0xf]
          %v1384 = vld [vmem:[%s8] sm:$0x1]
          %v1386 = vlaneseq
          %v1387 = vshrl.u32 %v1386, 7
          %v1388 = vsub.s32 0, %v1387
          %v1389 = vrot.slane %v1384, %v1388
          %v1407 = vunpack.c.l.b16 %v1368
          %v1408 = vunpack.c.l.b16 %v1369
          %v1409 = vunpack.c.l.b16 %v1370
          %v1410 = vunpack.c.l.b16 %v1371
          %v1411 = vunpack.c.l.b16 %v1372
          %v1412 = vunpack.c.l.b16 %v1373
          %v1413 = vunpack.c.l.b16 %v1374
          %v1414 = vunpack.c.l.b16 %v1375
          %v1415 = vunpack.c.l.b16 %v1376
          %v1416 = vunpack.c.l.b16 %v1377
          %v1417 = vunpack.c.l.b16 %v1378
          %v1418 = vunpack.c.l.b16 %v1379
          %v1419 = vunpack.c.l.b16 %v1380
          %v1420 = vunpack.c.l.b16 %v1381
          %v1421 = vunpack.c.l.b16 %v1382
          %v1422 = vunpack.c.l.b16 %v1383
          %v1423 = vpack.c.b16 %v1408, %v1407
          %v1424 = vpack.c.b16 %v1410, %v1409
          %v1425 = vpack.c.b16 %v1412, %v1411
          %v1426 = vpack.c.b16 %v1414, %v1413
          %v1427 = vpack.c.b16 %v1416, %v1415
          %v1428 = vpack.c.b16 %v1418, %v1417
          %v1429 = vpack.c.b16 %v1420, %v1419
          %v1430 = vpack.c.b16 %v1422, %v1421
          %1439 = vmatprep.subr.bf16.mxu0 0
          %1440 = vmatpush1.bf16.msra.mxu0 %v1423
          %1441 = vmatprep.subr.bf16.mxu0 0
          %1442 = vmatpush1.bf16.msra.mxu0 %v1424
          %1443 = vmatprep.subr.bf16.mxu0 0
          %1444 = vmatpush1.bf16.msra.mxu0 %v1425
          %1445 = vmatprep.subr.bf16.mxu0 0
          %1446 = vmatpush1.bf16.msra.mxu0 %v1426
          %1447 = vmatprep.subr.bf16.mxu0 0
          %1448 = vmatpush1.bf16.msra.mxu0 %v1427
          %1449 = vmatprep.subr.bf16.mxu0 0
          %1450 = vmatpush1.bf16.msra.mxu0 %v1428
          %1451 = vmatprep.subr.bf16.mxu0 0
          %1452 = vmatpush1.bf16.msra.mxu0 %v1429
          %1453 = vmatprep.subr.bf16.mxu0 0
          %1454 = vmatpush1.bf16.msra.mxu0 %v1430
          %1455 = vmatprep.subr.bf16.mxu0 0
          %1456 = vmatpush1.bf16.msra.mxu0 0
          %1457 = vmatprep.subr.bf16.mxu0 0
          %1458 = vmatpush1.bf16.msra.mxu0 0
          %1459 = vmatprep.subr.bf16.mxu0 0
          %1460 = vmatpush1.bf16.msra.mxu0 0
          %1461 = vmatprep.subr.bf16.mxu0 0
          %1462 = vmatpush1.bf16.msra.mxu0 0
          %1463 = vmatprep.subr.bf16.mxu0 0
          %1464 = vmatpush1.bf16.msra.mxu0 0
          %1465 = vmatprep.subr.bf16.mxu0 0
          %1466 = vmatpush1.bf16.msra.mxu0 0
          %1467 = vmatprep.subr.bf16.mxu0 0
          %1468 = vmatpush1.bf16.msra.mxu0 0
          %1469 = vmatprep.subr.bf16.mxu0 0
          %1470 = vmatpush1.bf16.msra.mxu0 0
          %1471 = vmatprep.mubr.bf16.mxu0 0
          %1472 = vmatmul.mubr.bf16.gmra.mrb[0].mxu0 %v1348
          %v1473 = vpop.f32.mrb[0].mxu0
          %v1474 = vadd.f32 %v1389, %v1473
          %v1475 = vpop.f32.mrb[0].mxu0
          %v1476 = vpop.f32.mrb[0].mxu0
          %v1477 = vadd.f32 %v1389, %v1476
          %v1478 = vpop.f32.mrb[0].mxu0
          %1479 = vmatprep.mubr.bf16.mxu0 0
          %1480 = vmatmul.mubr.bf16.gmra.mrb[0].mxu0 %v1349
          %v1481 = vpop.f32.mrb[0].mxu0
          %v1482 = vadd.f32 %v1389, %v1481
          %v1483 = vpop.f32.mrb[0].mxu0
          %v1484 = vpop.f32.mrb[0].mxu0
          %v1485 = vadd.f32 %v1389, %v1484
          %v1486 = vpop.f32.mrb[0].mxu0
          %1487 = vmatprep.mubr.bf16.mxu0 0
          %1488 = vmatmul.mubr.bf16.gmra.mrb[0].mxu0 %v1350
          %v1489 = vpop.f32.mrb[0].mxu0
          %v1490 = vadd.f32 %v1389, %v1489
          %v1491 = vpop.f32.mrb[0].mxu0
          %v1492 = vpop.f32.mrb[0].mxu0
          %v1493 = vadd.f32 %v1389, %v1492
          %v1494 = vpop.f32.mrb[0].mxu0
          %1495 = vmatprep.mubr.bf16.mxu0 0
          %1496 = vmatmul.mubr.bf16.gmra.mrb[0].mxu0 %v1351
          %v1497 = vpop.f32.mrb[0].mxu0
          %v1498 = vadd.f32 %v1389, %v1497
          %v1499 = vpop.f32.mrb[0].mxu0
          %v1500 = vpop.f32.mrb[0].mxu0
          %v1501 = vadd.f32 %v1389, %v1500
          %v1502 = vpop.f32.mrb[0].mxu0
          %1503 = vmatprep.mubr.bf16.mxu0 0
          %1504 = vmatmul.mubr.bf16.gmra.mrb[0].mxu0 %v1352
          %v1505 = vpop.f32.mrb[0].mxu0
          %v1506 = vadd.f32 %v1389, %v1505
          %v1507 = vpop.f32.mrb[0].mxu0
          %v1508 = vpop.f32.mrb[0].mxu0
          %v1509 = vadd.f32 %v1389, %v1508
          %v1510 = vpop.f32.mrb[0].mxu0
          %1511 = vmatprep.mubr.bf16.mxu0 0
          %1512 = vmatmul.mubr.bf16.gmra.mrb[0].mxu0 %v1353
          %v1513 = vpop.f32.mrb[0].mxu0
          %v1514 = vadd.f32 %v1389, %v1513
          %v1515 = vpop.f32.mrb[0].mxu0
          %v1516 = vpop.f32.mrb[0].mxu0
          %v1517 = vadd.f32 %v1389, %v1516
          %v1518 = vpop.f32.mrb[0].mxu0
          %1519 = vmatprep.mubr.bf16.mxu0 0
          %1520 = vmatmul.mubr.bf16.gmra.mrb[0].mxu0 %v1354
          %v1521 = vpop.f32.mrb[0].mxu0
          %v1522 = vadd.f32 %v1389, %v1521
          %v1523 = vpop.f32.mrb[0].mxu0
          %v1524 = vpop.f32.mrb[0].mxu0
          %v1525 = vadd.f32 %v1389, %v1524
          %v1526 = vpop.f32.mrb[0].mxu0
          %1527 = vmatprep.mubr.bf16.mxu0 0
          %1528 = vmatmul.mubr.bf16.gmra.mrb[0].mxu0 %v1355
          %v1529 = vpop.f32.mrb[0].mxu0
          %v1530 = vadd.f32 %v1389, %v1529
          %v1531 = vpop.f32.mrb[0].mxu0
          %v1532 = vpop.f32.mrb[0].mxu0
          %v1533 = vadd.f32 %v1389, %v1532
          %v1534 = vpop.f32.mrb[0].mxu0
          %1535 = vdwg.mxu0
          %1536 = vst [vmem:[#allocation17] sm:$0xff] %v1474
          %1537 = vst [vmem:[#allocation17 + $0x8] sm:$0xff] %v1477
          %1538 = vst [vmem:[#allocation17 + $0x10] sm:$0xff] %v1482
          %1539 = vst [vmem:[#allocation17 + $0x18] sm:$0xff] %v1485
          %1540 = vst [vmem:[#allocation17 + $0x20] sm:$0xff] %v1490
          %1541 = vst [vmem:[#allocation17 + $0x28] sm:$0xff] %v1493
          %1542 = vst [vmem:[#allocation17 + $0x30] sm:$0xff] %v1498
          %1543 = vst [vmem:[#allocation17 + $0x38] sm:$0xff] %v1501
          %1544 = vst [vmem:[#allocation17 + $0x40] sm:$0xff] %v1506
          %1545 = vst [vmem:[#allocation17 + $0x48] sm:$0xff] %v1509
          %1546 = vst [vmem:[#allocation17 + $0x50] sm:$0xff] %v1514
          %1547 = vst [vmem:[#allocation17 + $0x58] sm:$0xff] %v1517
          %1548 = vst [vmem:[#allocation17 + $0x60] sm:$0xff] %v1522
          %1549 = vst [vmem:[#allocation17 + $0x68] sm:$0xff] %v1525
          %1550 = vst [vmem:[#allocation17 + $0x70] sm:$0xff] %v1530
          %1551 = vst [vmem:[#allocation17 + $0x78] sm:$0xff] %v1533
        $region84: #{tpu_custom_call.1} parent=51 // pred_fallthru
          _
        // Predicated region
        $region85: #{tpu_custom_call.1} parent=51 // pred_check
          %p1552 = pneg %p222
        $region86: #{tpu_custom_call.1} parent=51 // pred_check_branch
          %1554 = sbr.rel (%p1552) target = $region88
        $region87: #{tpu_custom_call.1} parent=51 // pred_region
          %s1556 = ssub.s32 2048, 2048
          %1557 = vsyncadd [#allocation8], %s1556
          %s1558 = sshll.u32 [#allocation17], 4
          %s1559 = int_to_ptr.vmem [resolvable:$true] %s1558
          %1564 = dma.vmem_to_hbm [thread:$0]  %s1559, 2048, %s9, [#allocation8], 128, 128, 8
        $region88: #{tpu_custom_call.1} parent=51 // pred_fallthru
          _
        // Predicated region
        $region89: #{tpu_custom_call.1} parent=51 // pred_check
          %p1565 = pneg %p222
        $region90: #{tpu_custom_call.1} parent=51 // pred_check_branch
          %1567 = sbr.rel (%p1565) target = $region92
        $region91: #{tpu_custom_call.1} parent=51 // pred_region
          %1568 = dma.done [#allocation8], 2048
        $region92: #{tpu_custom_call.1} parent=51 // pred_fallthru
          _
      $region52: #{tpu_custom_call.1} parent=5 // pred_fallthru
        _
      %p1569 = scmp.le.s32.totalorder 2, %s26
      // Predicated region
      $region93: #{tpu_custom_call.1} parent=5 // pred_check
        %p1570 = pneg %p1569
      $region94: #{tpu_custom_call.1} parent=5 // pred_check_branch
        %1572 = sbr.rel (%p1570) target = $region96
      $region95: #{tpu_custom_call.1} parent=5 // pred_region
        %s1573 = ssub.s32 %s26, 2
      $region96: #{tpu_custom_call.1} parent=5 // pred_fallthru
        _
    $region6: #{tpu_custom_call.1} parent=1 // loop_footer
      %s30 = sadd.s32 1, %s26
    $region7: #{tpu_custom_call.1} parent=1 // loop_footer_branch
      %25 = sbr.rel target = $region3
    $region8: #{tpu_custom_call.1} parent=1 // loop_exit
      _
    %1574 = vsyncpa [#allocation7], 1
    %s1575 = scalar_lea.sflag [#allocation7], 1
    %1576 = vsyncpa %s1575, 1
    %1577 = vsyncpa [#allocation10], 1
    %1578 = vsyncpa [#allocation13], 1
    %s1579 = scalar_lea.sflag [#allocation13], 1
    %1580 = vsyncpa %s1579, 1
    %1581 = vsyncpa [#allocation16], 1
    %1582 = vsyncpa [#allocation8], 1
    %s1583 = scalar_lea.sflag [#allocation8], 1
    %1584 = vsyncpa %s1583, 1

</llo_original>
